<compile_context>
chip_gen: v7x
topology: tpu7x:2x2x1
jax: 0.10.0
libtpu: 0.0.40
codegen_flags: <defaults>
</compile_context>

<pallas_src>
import numpy as np
import jax
import jax.numpy as jnp
from jax.experimental import pallas as pl
from jax.experimental.pallas import tpu as pltpu

_LANE = 128


def _round_up(x, m):
    return (x + m - 1) // m * m


# --------------------------- fused Pallas kernel ----------------------------

def _fused_embed_update_call(lower_bounds, upper_bounds, layers, prm, p):
    """Build & invoke one fused Pallas kernel for the whole fwd+bwd sweep.

    Returns one slab per ReLU layer k = 1..num_relus, each of shape
    (p, round_up(B*n_k, 128)) with slab[c, b*n_k + j] == mu[k][b, j, c]
    (pad columns beyond B*n_k are zero).
    """
    B = int(lower_bounds[0].shape[0])
    n_sizes = [int(np.prod(lb.shape[1:])) for lb in lower_bounds]
    relu_positions = [i + 1 for i, l in enumerate(layers) if l[0] == "relu"]
    len_layers = relu_positions[len(lower_bounds) - 2]

    f32 = jnp.float32
    args = []

    def add(x):
        args.append(jnp.asarray(x, f32))
        return len(args) - 1

    # EmbedLayerUpdate parameters, hoisted & oriented once.  fc2 / fc3 are
    # pre-split into (p, p) halves so the kernel never materializes a
    # (2p, N) sublane concat.
    pi = {
        "fc1_w":  add(prm["fc1_w"]),                    # (p, 3)
        "fc1_b":  add(prm["fc1_b"].reshape(p, 1)),
        "fc11_w": add(prm["fc1_1_w"]),                  # (p, p)
        "fc11_b": add(prm["fc1_1_b"].reshape(p, 1)),
        "fc2_wa": add(prm["fc2_w"][:, :p]),             # acts on `pre`
        "fc2_wb": add(prm["fc2_w"][:, p:]),             # acts on e1
        "fc2_b":  add(prm["fc2_b"].reshape(p, 1)),
        "fc21_w": add(prm["fc2_1_w"]),
        "fc21_b": add(prm["fc2_1_b"].reshape(p, 1)),
        "fc3_wa": add(prm["fc3_w"][:, :p]),
        "fc3_wb": add(prm["fc3_w"][:, p:]),
        "fc3_b":  add(prm["fc3_b"].reshape(p, 1)),
        "fc31_w": add(prm["fc3_1_w"]),
        "fc31_b": add(prm["fc3_1_b"].reshape(p, 1)),
    }

    # Static per-layer step descriptors.  Plain per-batch weights (no kron
    # block-diagonals).  The very first linear sees the all-ones mu[0]; its
    # matmul is hoisted to a precomputed (1, B*n_out) row (broadcast-only in
    # kernel), which also removes that layer's never-used backward weight.
    steps = []
    bound_idx = 1
    for layer in layers[:len_layers]:
        if layer[0] == "linear":
            _, W, bvec = layer
            W = jnp.asarray(W, f32)
            bvec = jnp.asarray(bvec, f32)
            n_out, n_in = int(W.shape[0]), int(W.shape[1])
            i_lb = add(jnp.reshape(lower_bounds[bound_idx], (1, B * n_out)))
            i_ub = add(jnp.reshape(upper_bounds[bound_idx], (1, B * n_out)))
            if len(steps) == 0:
                row = jnp.tile(jnp.reshape(W.sum(axis=1) + bvec, (1, n_out)), (1, B))
                steps.append(("linear0", n_in, n_out, add(row), i_lb, i_ub))
            else:
                i_wt = add(W.T)                               # (n_in, n_out)  fwd
                i_w = add(W)                                  # (n_out, n_in)  bwd
                i_b = add(jnp.reshape(bvec, (1, n_out)))
                steps.append(("linear", n_in, n_out, i_wt, i_w, i_b, i_lb, i_ub))
            bound_idx += 1
        elif layer[0] == "relu":
            steps.append(("relu",))
        else:
            # TODO(synk): conv / flatten branches of EmbedLayerUpdate.
            raise NotImplementedError(layer[0])

    num_relus = sum(1 for s in steps if s[0] == "relu")
    n_inputs = len(args)
    out_widths = [_round_up(B * n_sizes[r], _LANE) for r in range(1, num_relus + 1)]

    def kernel(*refs):
        in_refs, out_refs = refs[:n_inputs], refs[n_inputs:]
        g = lambda k: in_refs[pi[k]][...]
        fc1_w, fc1_b = g("fc1_w"), g("fc1_b")
        fc11_w, fc11_b = g("fc11_w"), g("fc11_b")
        fc2_wa, fc2_wb, fc2_b = g("fc2_wa"), g("fc2_wb"), g("fc2_b")
        fc21_w, fc21_b = g("fc21_w"), g("fc21_b")
        fc3_wa, fc3_wb, fc3_b = g("fc3_wa"), g("fc3_wb"), g("fc3_b")
        fc31_w, fc31_b = g("fc31_w"), g("fc31_b")

        # Embedding slabs in lane-dense (p, B*n) layout; S[0] (all-ones) is
        # never materialized (first linear is hoisted to a broadcast row).
        S = [None]
        P = cur_lb = cur_ub = None

        # ---------------- forward sweep ----------------
        for st in steps:
            if st[0] == "linear0":
                _, n_in, n_out, i_row, i_lb, i_ub = st
                # ones @ W^T + b has identical rows -> broadcast precomputed row.
                P = jnp.broadcast_to(in_refs[i_row][...], (p, B * n_out))
                cur_lb, cur_ub = in_refs[i_lb][...], in_refs[i_ub][...]
            elif st[0] == "linear":
                _, n_in, n_out, i_wt, _, i_b, i_lb, i_ub = st
                src = S[-1]
                if src is None:  # linear before any relu (not hoisted): mu is ones
                    src = jnp.ones((p, B * n_sizes[0]), f32)
                wt = in_refs[i_wt][...]
                brow = in_refs[i_b][...]
                parts = [jnp.dot(src[:, bb * n_in:(bb + 1) * n_in], wt,
                                 preferred_element_type=f32) + brow
                         for bb in range(B)]
                P = jnp.concatenate(parts, axis=1)
                cur_lb, cur_ub = in_refs[i_lb][...], in_refs[i_ub][...]
            else:  # relu
                lower_temp = cur_lb - jnp.maximum(cur_lb, 0.0)
                upper_temp = jnp.maximum(cur_ub, 0.0)
                diff = upper_temp - lower_temp
                # exact divide on purpose: approx EUP reciprocal risks tolerance
                upper_ratio = upper_temp / (diff + 1e-8)
                lower_ratio = 1.0 - upper_ratio
                # fc1 (input dim 3) as broadcast mul-adds (VPU), not a K=3 matmul
                h = jnp.maximum(fc1_w[:, 0:1] * upper_ratio
                                + fc1_w[:, 1:2] * lower_ratio
                                + fc1_w[:, 2:3] * diff + fc1_b, 0.0)
                e1 = jnp.dot(fc11_w, h, preferred_element_type=f32) + fc11_b
                # split-K: no (2p, N) concat materialization
                z = jnp.maximum(jnp.dot(fc2_wa, P, preferred_element_type=f32)
                                + jnp.dot(fc2_wb, e1, preferred_element_type=f32)
                                + fc2_b, 0.0)
                S.append(jnp.dot(fc21_w, z, preferred_element_type=f32) + fc21_b)

        # ---------------- backward sweep ----------------
        PB = None
        rk = len(S) - 1
        for st in reversed(steps[1:]):
            if st[0] == "relu":
                if PB is not None:
                    z = jnp.maximum(jnp.dot(fc3_wa, PB, preferred_element_type=f32)
                                    + jnp.dot(fc3_wb, S[rk],
                                              preferred_element_type=f32)
                                    + fc3_b, 0.0)
                    S[rk] = jnp.dot(fc31_w, z, preferred_element_type=f32) + fc31_b
                PB = S[rk]
                rk -= 1
            else:  # "linear" (steps[0] is excluded, so never "linear0")
                _, n_in, n_out, _, i_w, i_b, _, _ = st
                w = in_refs[i_w][...]
                brow = in_refs[i_b][...]
                parts = [jnp.dot(PB[:, bb * n_out:(bb + 1) * n_out] - brow, w,
                                 preferred_element_type=f32)
                         for bb in range(B)]
                PB = jnp.concatenate(parts, axis=1)

        # Lane-dense output stores: zero-pad to a multiple of 128 lanes so
        # every store is an unmasked full-width vst; wrapper drops the pad.
        # TODO(synk): at MB-scale slabs, switch to pl.ANY outputs + manual
        # make_async_copy writeback overlapped with the backward sweep.
        for r in range(1, len(S)):
            w_real = B * n_sizes[r]
            val = S[r]
            pad = out_widths[r - 1] - w_real
            if pad:
                val = jnp.concatenate([val, jnp.zeros((p, pad), f32)], axis=1)
            out_refs[r - 1][...] = val

    # Advisory cost estimate (real FLOPs — no kron zero-padding counted).
    flops = 0
    for st in steps:
        if st[0] == "linear":
            flops += 4 * B * p * st[1] * st[2]          # fwd + bwd per-batch dots
    for r in range(1, num_relus + 1):
        N = B * n_sizes[r]
        flops += 2 * N * (3 * p + 4 * p * p)            # fwd relu MLP
    for r in range(1, num_relus):
        N = B * n_sizes[r]
        flops += 2 * N * (3 * p * p)                    # bwd relu MLP
    in_bytes = sum(int(np.prod(a.shape)) * 4 for a in args)
    out_bytes = sum(p * w * 4 for w in out_widths)
    slab_bytes = 4 * p * sum(B * n for n in n_sizes[1:])
    # Size-aware VMEM budget (everything-resident working set + headroom),
    # capped well below the smallest per-TC VMEM (v7x: 64 MiB).
    vmem_limit = int(min(32 * 1024 * 1024,
                         max(4 * 1024 * 1024,
                             16 * (in_bytes + out_bytes + slab_bytes))))

    outs = pl.pallas_call(
        kernel,
        out_shape=tuple(jax.ShapeDtypeStruct((p, w), f32) for w in out_widths),
        compiler_params=pltpu.CompilerParams(vmem_limit_bytes=vmem_limit),
        cost_estimate=pl.CostEstimate(flops=int(flops), transcendentals=0,
                                      bytes_accessed=int(in_bytes + out_bytes)),
    )(*args)
    return tuple(outs) if isinstance(outs, (list, tuple)) else (outs,)


# ------------------------------ glue (plain JAX) ---------------------------

def init_mu_jax(lower_bounds, p):
    batch_size = lower_bounds[0].shape[0]
    return [jnp.ones((batch_size, int(np.prod(lb.shape[1:])), p), jnp.float32)
            for lb in lower_bounds]


def embed_updates(lower_bounds, upper_bounds, layers, prm, p):
    """Pallas-backed equivalent of EmbedUpdates.forward for Linear/ReLU layers."""
    B = int(lower_bounds[0].shape[0])
    n_sizes = [int(np.prod(lb.shape[1:])) for lb in lower_bounds]
    slabs = _fused_embed_update_call(lower_bounds, upper_bounds, layers, prm, p)
    mu = [jnp.ones((B, n_sizes[0], p), jnp.float32)]
    for r, S in enumerate(slabs, start=1):
        n = n_sizes[r]
        S = S[:, :B * n]  # drop lane padding
        # (p, B*n) lane-dense kernel output -> (B, n, p) module output layout.
        mu.append(jnp.transpose(S.reshape(p, B, n), (1, 2, 0)))
    return mu


# ---------------------------- pure-JAX reference ----------------------------

def ref_embed_updates(lower_bounds, upper_bounds, layers, prm, p):
    def lin(x, w, b):
        return x @ w.T + b

    batch = lower_bounds[0].shape[0]
    mu = init_mu_jax(lower_bounds, p)
    relu_positions = [i + 1 for i, l in enumerate(layers) if l[0] == "relu"]
    len_layers = relu_positions[len(lower_bounds) - 2]

    relu_idx, bound_idx = 0, 1
    pre = lb_pre = ub_pre = None
    for layer in layers[:len_layers]:
        if layer[0] == "linear":
            _, W, b = layer
            pre = jnp.einsum("oi,bip->bop", W, mu[relu_idx]) + b[None, :, None]
            pre = pre.reshape(-1, p)
            lb_pre = lower_bounds[bound_idx].reshape(-1)
            ub_pre = upper_bounds[bound_idx].reshape(-1)
            bound_idx += 1
        else:  # relu
            lower_temp = lb_pre - jnp.maximum(lb_pre, 0)
            upper_temp = jnp.maximum(ub_pre, 0)
            diff = upper_temp - lower_temp
            ur = upper_temp / (diff + 1e-8)
            lr = 1 - ur
            info = jnp.stack([ur, lr, diff], axis=1)
            e1 = lin(jnp.maximum(lin(info, prm["fc1_w"], prm["fc1_b"]), 0),
                     prm["fc1_1_w"], prm["fc1_1_b"])
            cat = jnp.concatenate([pre, e1], axis=1)
            out = lin(jnp.maximum(lin(cat, prm["fc2_w"], prm["fc2_b"]), 0),
                      prm["fc2_1_w"], prm["fc2_1_b"])
            relu_idx += 1
            mu[relu_idx] = out.reshape(mu[relu_idx].shape)

    pre_back = None
    bound_idx -= 1
    for layer in reversed(layers[1:len_layers]):
        if layer[0] == "relu":
            if pre_back is not None:
                n_cur = mu[relu_idx].shape[1]
                pre_r = (pre_back.reshape(batch, p, n_cur)
                         .transpose(0, 2, 1).reshape(-1, p))
                e = mu[relu_idx].reshape(-1, p)
                cat = jnp.concatenate([pre_r, e], axis=1)
                out = lin(jnp.maximum(lin(cat, prm["fc3_w"], prm["fc3_b"]), 0),
                          prm["fc3_1_w"], prm["fc3_1_b"])
                mu[relu_idx] = out.reshape(mu[relu_idx].shape)
            n_cur = int(np.prod(lower_bounds[bound_idx].shape[1:]))
            pre_back = mu[relu_idx].transpose(0, 2, 1).reshape(-1, n_cur)
            relu_idx -= 1
        else:
            _, W, b = layer
            pre_back = (pre_back - b[None, :]) @ W
            bound_idx -= 1
    return mu


# ----------------------------------- main -----------------------------------

if __name__ == "__main__":
    key = jax.random.PRNGKey(0)
    p = 16
    batch = 2
    dims = [8, 32, 16, 10]          # input -> h1 -> h2 -> output
    keys = iter(jax.random.split(key, 32))

    def rnd(shape, scale):
        return (scale * jax.random.normal(next(keys), shape)).astype(jnp.float32)

    w_scale = 0.25                  # keep activations O(1) for a tight f32 check

    # network layers: [Linear, ReLU, Linear, ReLU, Linear]
    layers = [
        ("linear", rnd((dims[1], dims[0]), w_scale), rnd((dims[1],), w_scale)),
        ("relu",),
        ("linear", rnd((dims[2], dims[1]), w_scale), rnd((dims[2],), w_scale)),
        ("relu",),
        ("linear", rnd((dims[3], dims[2]), w_scale), rnd((dims[3],), w_scale)),
    ]

    # EmbedLayerUpdate parameters (deterministic, shapes from __init__)
    prm = {
        "fc1_w": rnd((p, 3), w_scale),      "fc1_b": rnd((p,), w_scale),
        "fc1_1_w": rnd((p, p), w_scale),    "fc1_1_b": rnd((p,), w_scale),
        "fc2_w": rnd((p, 2 * p), w_scale),  "fc2_b": rnd((p,), w_scale),
        "fc2_1_w": rnd((p, p), w_scale),    "fc2_1_b": rnd((p,), w_scale),
        "fc3_w": rnd((p, 2 * p), w_scale),  "fc3_b": rnd((p,), w_scale),
        "fc3_1_w": rnd((p, p), w_scale),    "fc3_1_b": rnd((p,), w_scale),
    }

    # bounds: input bounds + pre-activation bounds for each ReLU
    lower_bounds, upper_bounds = [], []
    for n in dims[:3]:
        a = rnd((batch, n), 1.0)
        c = rnd((batch, n), 1.0)
        lower_bounds.append(jnp.minimum(a, c))
        upper_bounds.append(jnp.maximum(a, c))

    mu = embed_updates(lower_bounds, upper_bounds, layers, prm, p)
    mu = jax.block_until_ready(mu)

    mu_ref = ref_embed_updates(lower_bounds, upper_bounds, layers, prm, p)
    for got, want in zip(mu, mu_ref):
        got = np.asarray(got)
        want = np.asarray(want)
        # f32 accumulation-order noise scales with data magnitude; use a
        # magnitude-aware absolute floor alongside the relative check.
        atol = 1e-4 * max(1.0, float(np.max(np.abs(want))))
        np.testing.assert_allclose(got, want, rtol=1e-4, atol=atol)

    print("KERNEL_OK")
</pallas_src>

<mosaic_0001>
module attributes {stable_mosaic.version = 11 : i64} {
  func.func @kernel(%arg0: memref<16x3xf32, #tpu.memory_space<vmem>>, %arg1: memref<16x1xf32, #tpu.memory_space<vmem>>, %arg2: memref<16x16xf32, #tpu.memory_space<vmem>>, %arg3: memref<16x1xf32, #tpu.memory_space<vmem>>, %arg4: memref<16x16xf32, #tpu.memory_space<vmem>>, %arg5: memref<16x16xf32, #tpu.memory_space<vmem>>, %arg6: memref<16x1xf32, #tpu.memory_space<vmem>>, %arg7: memref<16x16xf32, #tpu.memory_space<vmem>>, %arg8: memref<16x1xf32, #tpu.memory_space<vmem>>, %arg9: memref<16x16xf32, #tpu.memory_space<vmem>>, %arg10: memref<16x16xf32, #tpu.memory_space<vmem>>, %arg11: memref<16x1xf32, #tpu.memory_space<vmem>>, %arg12: memref<16x16xf32, #tpu.memory_space<vmem>>, %arg13: memref<16x1xf32, #tpu.memory_space<vmem>>, %arg14: memref<1x64xf32, #tpu.memory_space<vmem>>, %arg15: memref<1x64xf32, #tpu.memory_space<vmem>>, %arg16: memref<1x64xf32, #tpu.memory_space<vmem>>, %arg17: memref<1x32xf32, #tpu.memory_space<vmem>>, %arg18: memref<1x32xf32, #tpu.memory_space<vmem>>, %arg19: memref<32x16xf32, #tpu.memory_space<vmem>>, %arg20: memref<16x32xf32, #tpu.memory_space<vmem>>, %arg21: memref<1x16xf32, #tpu.memory_space<vmem>>, %arg22: memref<16x128xf32, #tpu.memory_space<vmem>>, %arg23: memref<16x128xf32, #tpu.memory_space<vmem>>) attributes {dimension_semantics = [], scalar_prefetch = 0 : i64, scratch_operands = 0 : i64, tpu.core_type = #tpu.core_type<tc>} {
    %c0 = arith.constant 0 : index
    %c0_0 = arith.constant 0 : index
    %0 = vector.load %arg0[%c0, %c0_0] : memref<16x3xf32, #tpu.memory_space<vmem>>, vector<16x3xf32>
    %c0_1 = arith.constant 0 : index
    %c0_2 = arith.constant 0 : index
    %1 = vector.load %arg1[%c0_1, %c0_2] : memref<16x1xf32, #tpu.memory_space<vmem>>, vector<16x1xf32>
    %c0_3 = arith.constant 0 : index
    %c0_4 = arith.constant 0 : index
    %2 = vector.load %arg2[%c0_3, %c0_4] : memref<16x16xf32, #tpu.memory_space<vmem>>, vector<16x16xf32>
    %c0_5 = arith.constant 0 : index
    %c0_6 = arith.constant 0 : index
    %3 = vector.load %arg3[%c0_5, %c0_6] : memref<16x1xf32, #tpu.memory_space<vmem>>, vector<16x1xf32>
    %c0_7 = arith.constant 0 : index
    %c0_8 = arith.constant 0 : index
    %4 = vector.load %arg4[%c0_7, %c0_8] : memref<16x16xf32, #tpu.memory_space<vmem>>, vector<16x16xf32>
    %c0_9 = arith.constant 0 : index
    %c0_10 = arith.constant 0 : index
    %5 = vector.load %arg5[%c0_9, %c0_10] : memref<16x16xf32, #tpu.memory_space<vmem>>, vector<16x16xf32>
    %c0_11 = arith.constant 0 : index
    %c0_12 = arith.constant 0 : index
    %6 = vector.load %arg6[%c0_11, %c0_12] : memref<16x1xf32, #tpu.memory_space<vmem>>, vector<16x1xf32>
    %c0_13 = arith.constant 0 : index
    %c0_14 = arith.constant 0 : index
    %7 = vector.load %arg7[%c0_13, %c0_14] : memref<16x16xf32, #tpu.memory_space<vmem>>, vector<16x16xf32>
    %c0_15 = arith.constant 0 : index
    %c0_16 = arith.constant 0 : index
    %8 = vector.load %arg8[%c0_15, %c0_16] : memref<16x1xf32, #tpu.memory_space<vmem>>, vector<16x1xf32>
    %c0_17 = arith.constant 0 : index
    %c0_18 = arith.constant 0 : index
    %9 = vector.load %arg9[%c0_17, %c0_18] : memref<16x16xf32, #tpu.memory_space<vmem>>, vector<16x16xf32>
    %c0_19 = arith.constant 0 : index
    %c0_20 = arith.constant 0 : index
    %10 = vector.load %arg10[%c0_19, %c0_20] : memref<16x16xf32, #tpu.memory_space<vmem>>, vector<16x16xf32>
    %c0_21 = arith.constant 0 : index
    %c0_22 = arith.constant 0 : index
    %11 = vector.load %arg11[%c0_21, %c0_22] : memref<16x1xf32, #tpu.memory_space<vmem>>, vector<16x1xf32>
    %c0_23 = arith.constant 0 : index
    %c0_24 = arith.constant 0 : index
    %12 = vector.load %arg12[%c0_23, %c0_24] : memref<16x16xf32, #tpu.memory_space<vmem>>, vector<16x16xf32>
    %c0_25 = arith.constant 0 : index
    %c0_26 = arith.constant 0 : index
    %13 = vector.load %arg13[%c0_25, %c0_26] : memref<16x1xf32, #tpu.memory_space<vmem>>, vector<16x1xf32>
    %c0_27 = arith.constant 0 : index
    %c0_28 = arith.constant 0 : index
    %14 = vector.load %arg16[%c0_27, %c0_28] : memref<1x64xf32, #tpu.memory_space<vmem>>, vector<1x64xf32>
    %15 = vector.shape_cast %14 : vector<1x64xf32> to vector<1x64xf32>
    %16 = vector.broadcast %15 : vector<1x64xf32> to vector<16x64xf32>
    %c0_29 = arith.constant 0 : index
    %c0_30 = arith.constant 0 : index
    %17 = vector.load %arg14[%c0_29, %c0_30] : memref<1x64xf32, #tpu.memory_space<vmem>>, vector<1x64xf32>
    %c0_31 = arith.constant 0 : index
    %c0_32 = arith.constant 0 : index
    %18 = vector.load %arg15[%c0_31, %c0_32] : memref<1x64xf32, #tpu.memory_space<vmem>>, vector<1x64xf32>
    %cst = arith.constant 0.000000e+00 : f32
    %19 = vector.broadcast %cst : f32 to vector<1x64xf32>
    %20 = arith.maximumf %17, %19 : vector<1x64xf32>
    %21 = arith.subf %17, %20 : vector<1x64xf32>
    %cst_33 = arith.constant 0.000000e+00 : f32
    %22 = vector.broadcast %cst_33 : f32 to vector<1x64xf32>
    %23 = arith.maximumf %18, %22 : vector<1x64xf32>
    %24 = arith.subf %23, %21 : vector<1x64xf32>
    %cst_34 = arith.constant 9.99999993E-9 : f32
    %25 = vector.broadcast %cst_34 : f32 to vector<1x64xf32>
    %26 = arith.addf %24, %25 : vector<1x64xf32>
    %27 = arith.divf %23, %26 : vector<1x64xf32>
    %cst_35 = arith.constant 1.000000e+00 : f32
    %28 = vector.broadcast %cst_35 : f32 to vector<1x64xf32>
    %29 = arith.subf %28, %27 : vector<1x64xf32>
    %30 = vector.extract_strided_slice %0 {offsets = [0, 0], sizes = [16, 1], strides = [1, 1]} : vector<16x3xf32> to vector<16x1xf32>
    %31 = vector.broadcast %30 : vector<16x1xf32> to vector<16x64xf32>
    %32 = vector.broadcast %27 : vector<1x64xf32> to vector<16x64xf32>
    %33 = arith.mulf %31, %32 : vector<16x64xf32>
    %34 = vector.extract_strided_slice %0 {offsets = [0, 1], sizes = [16, 1], strides = [1, 1]} : vector<16x3xf32> to vector<16x1xf32>
    %35 = vector.broadcast %34 : vector<16x1xf32> to vector<16x64xf32>
    %36 = vector.broadcast %29 : vector<1x64xf32> to vector<16x64xf32>
    %37 = arith.mulf %35, %36 : vector<16x64xf32>
    %38 = arith.addf %33, %37 : vector<16x64xf32>
    %39 = vector.extract_strided_slice %0 {offsets = [0, 2], sizes = [16, 1], strides = [1, 1]} : vector<16x3xf32> to vector<16x1xf32>
    %40 = vector.broadcast %39 : vector<16x1xf32> to vector<16x64xf32>
    %41 = vector.broadcast %24 : vector<1x64xf32> to vector<16x64xf32>
    %42 = arith.mulf %40, %41 : vector<16x64xf32>
    %43 = arith.addf %38, %42 : vector<16x64xf32>
    %44 = vector.broadcast %1 : vector<16x1xf32> to vector<16x64xf32>
    %45 = arith.addf %43, %44 : vector<16x64xf32>
    %cst_36 = arith.constant 0.000000e+00 : f32
    %46 = vector.broadcast %cst_36 : f32 to vector<16x64xf32>
    %47 = arith.maximumf %45, %46 : vector<16x64xf32>
    %cst_37 = arith.constant dense<0.000000e+00> : vector<16x64xf32>
    %48 = tpu.matmul %2, %47, %cst_37 {dimension_numbers = #tpu.dot_dimension_numbers<[1], [0], [0], [1], [0, 0, 1, 1], [], []>} : vector<16x16xf32>, vector<16x64xf32>, vector<16x64xf32> -> vector<16x64xf32>
    %49 = vector.broadcast %3 : vector<16x1xf32> to vector<16x64xf32>
    %50 = arith.addf %48, %49 : vector<16x64xf32>
    %cst_38 = arith.constant dense<0.000000e+00> : vector<16x64xf32>
    %51 = tpu.matmul %4, %16, %cst_38 {dimension_numbers = #tpu.dot_dimension_numbers<[1], [0], [0], [1], [0, 0, 1, 1], [], []>} : vector<16x16xf32>, vector<16x64xf32>, vector<16x64xf32> -> vector<16x64xf32>
    %cst_39 = arith.constant dense<0.000000e+00> : vector<16x64xf32>
    %52 = tpu.matmul %5, %50, %cst_39 {dimension_numbers = #tpu.dot_dimension_numbers<[1], [0], [0], [1], [0, 0, 1, 1], [], []>} : vector<16x16xf32>, vector<16x64xf32>, vector<16x64xf32> -> vector<16x64xf32>
    %53 = arith.addf %51, %52 : vector<16x64xf32>
    %54 = vector.broadcast %6 : vector<16x1xf32> to vector<16x64xf32>
    %55 = arith.addf %53, %54 : vector<16x64xf32>
    %cst_40 = arith.constant 0.000000e+00 : f32
    %56 = vector.broadcast %cst_40 : f32 to vector<16x64xf32>
    %57 = arith.maximumf %55, %56 : vector<16x64xf32>
    %cst_41 = arith.constant dense<0.000000e+00> : vector<16x64xf32>
    %58 = tpu.matmul %7, %57, %cst_41 {dimension_numbers = #tpu.dot_dimension_numbers<[1], [0], [0], [1], [0, 0, 1, 1], [], []>} : vector<16x16xf32>, vector<16x64xf32>, vector<16x64xf32> -> vector<16x64xf32>
    %59 = vector.broadcast %8 : vector<16x1xf32> to vector<16x64xf32>
    %60 = arith.addf %58, %59 : vector<16x64xf32>
    %c0_42 = arith.constant 0 : index
    %c0_43 = arith.constant 0 : index
    %61 = vector.load %arg19[%c0_42, %c0_43] : memref<32x16xf32, #tpu.memory_space<vmem>>, vector<32x16xf32>
    %c0_44 = arith.constant 0 : index
    %c0_45 = arith.constant 0 : index
    %62 = vector.load %arg21[%c0_44, %c0_45] : memref<1x16xf32, #tpu.memory_space<vmem>>, vector<1x16xf32>
    %63 = vector.extract_strided_slice %60 {offsets = [0, 0], sizes = [16, 32], strides = [1, 1]} : vector<16x64xf32> to vector<16x32xf32>
    %cst_46 = arith.constant dense<0.000000e+00> : vector<16x16xf32>
    %64 = tpu.matmul %63, %61, %cst_46 {dimension_numbers = #tpu.dot_dimension_numbers<[1], [0], [0], [1], [0, 0, 1, 1], [], []>} : vector<16x32xf32>, vector<32x16xf32>, vector<16x16xf32> -> vector<16x16xf32>
    %65 = vector.broadcast %62 : vector<1x16xf32> to vector<16x16xf32>
    %66 = arith.addf %64, %65 : vector<16x16xf32>
    %67 = vector.extract_strided_slice %60 {offsets = [0, 32], sizes = [16, 32], strides = [1, 1]} : vector<16x64xf32> to vector<16x32xf32>
    %cst_47 = arith.constant dense<0.000000e+00> : vector<16x16xf32>
    %68 = tpu.matmul %67, %61, %cst_47 {dimension_numbers = #tpu.dot_dimension_numbers<[1], [0], [0], [1], [0, 0, 1, 1], [], []>} : vector<16x32xf32>, vector<32x16xf32>, vector<16x16xf32> -> vector<16x16xf32>
    %69 = vector.broadcast %62 : vector<1x16xf32> to vector<16x16xf32>
    %70 = arith.addf %68, %69 : vector<16x16xf32>
    %71 = tpu.concatenate %66, %70 in 1 : vector<16x16xf32>, vector<16x16xf32> -> vector<16x32xf32>
    %c0_48 = arith.constant 0 : index
    %c0_49 = arith.constant 0 : index
    %72 = vector.load %arg17[%c0_48, %c0_49] : memref<1x32xf32, #tpu.memory_space<vmem>>, vector<1x32xf32>
    %c0_50 = arith.constant 0 : index
    %c0_51 = arith.constant 0 : index
    %73 = vector.load %arg18[%c0_50, %c0_51] : memref<1x32xf32, #tpu.memory_space<vmem>>, vector<1x32xf32>
    %cst_52 = arith.constant 0.000000e+00 : f32
    %74 = vector.broadcast %cst_52 : f32 to vector<1x32xf32>
    %75 = arith.maximumf %72, %74 : vector<1x32xf32>
    %76 = arith.subf %72, %75 : vector<1x32xf32>
    %cst_53 = arith.constant 0.000000e+00 : f32
    %77 = vector.broadcast %cst_53 : f32 to vector<1x32xf32>
    %78 = arith.maximumf %73, %77 : vector<1x32xf32>
    %79 = arith.subf %78, %76 : vector<1x32xf32>
    %cst_54 = arith.constant 9.99999993E-9 : f32
    %80 = vector.broadcast %cst_54 : f32 to vector<1x32xf32>
    %81 = arith.addf %79, %80 : vector<1x32xf32>
    %82 = arith.divf %78, %81 : vector<1x32xf32>
    %cst_55 = arith.constant 1.000000e+00 : f32
    %83 = vector.broadcast %cst_55 : f32 to vector<1x32xf32>
    %84 = arith.subf %83, %82 : vector<1x32xf32>
    %85 = vector.extract_strided_slice %0 {offsets = [0, 0], sizes = [16, 1], strides = [1, 1]} : vector<16x3xf32> to vector<16x1xf32>
    %86 = vector.broadcast %85 : vector<16x1xf32> to vector<16x32xf32>
    %87 = vector.broadcast %82 : vector<1x32xf32> to vector<16x32xf32>
    %88 = arith.mulf %86, %87 : vector<16x32xf32>
    %89 = vector.extract_strided_slice %0 {offsets = [0, 1], sizes = [16, 1], strides = [1, 1]} : vector<16x3xf32> to vector<16x1xf32>
    %90 = vector.broadcast %89 : vector<16x1xf32> to vector<16x32xf32>
    %91 = vector.broadcast %84 : vector<1x32xf32> to vector<16x32xf32>
    %92 = arith.mulf %90, %91 : vector<16x32xf32>
    %93 = arith.addf %88, %92 : vector<16x32xf32>
    %94 = vector.extract_strided_slice %0 {offsets = [0, 2], sizes = [16, 1], strides = [1, 1]} : vector<16x3xf32> to vector<16x1xf32>
    %95 = vector.broadcast %94 : vector<16x1xf32> to vector<16x32xf32>
    %96 = vector.broadcast %79 : vector<1x32xf32> to vector<16x32xf32>
    %97 = arith.mulf %95, %96 : vector<16x32xf32>
    %98 = arith.addf %93, %97 : vector<16x32xf32>
    %99 = vector.broadcast %1 : vector<16x1xf32> to vector<16x32xf32>
    %100 = arith.addf %98, %99 : vector<16x32xf32>
    %cst_56 = arith.constant 0.000000e+00 : f32
    %101 = vector.broadcast %cst_56 : f32 to vector<16x32xf32>
    %102 = arith.maximumf %100, %101 : vector<16x32xf32>
    %cst_57 = arith.constant dense<0.000000e+00> : vector<16x32xf32>
    %103 = tpu.matmul %2, %102, %cst_57 {dimension_numbers = #tpu.dot_dimension_numbers<[1], [0], [0], [1], [0, 0, 1, 1], [], []>} : vector<16x16xf32>, vector<16x32xf32>, vector<16x32xf32> -> vector<16x32xf32>
    %104 = vector.broadcast %3 : vector<16x1xf32> to vector<16x32xf32>
    %105 = arith.addf %103, %104 : vector<16x32xf32>
    %cst_58 = arith.constant dense<0.000000e+00> : vector<16x32xf32>
    %106 = tpu.matmul %4, %71, %cst_58 {dimension_numbers = #tpu.dot_dimension_numbers<[1], [0], [0], [1], [0, 0, 1, 1], [], []>} : vector<16x16xf32>, vector<16x32xf32>, vector<16x32xf32> -> vector<16x32xf32>
    %cst_59 = arith.constant dense<0.000000e+00> : vector<16x32xf32>
    %107 = tpu.matmul %5, %105, %cst_59 {dimension_numbers = #tpu.dot_dimension_numbers<[1], [0], [0], [1], [0, 0, 1, 1], [], []>} : vector<16x16xf32>, vector<16x32xf32>, vector<16x32xf32> -> vector<16x32xf32>
    %108 = arith.addf %106, %107 : vector<16x32xf32>
    %109 = vector.broadcast %6 : vector<16x1xf32> to vector<16x32xf32>
    %110 = arith.addf %108, %109 : vector<16x32xf32>
    %cst_60 = arith.constant 0.000000e+00 : f32
    %111 = vector.broadcast %cst_60 : f32 to vector<16x32xf32>
    %112 = arith.maximumf %110, %111 : vector<16x32xf32>
    %cst_61 = arith.constant dense<0.000000e+00> : vector<16x32xf32>
    %113 = tpu.matmul %7, %112, %cst_61 {dimension_numbers = #tpu.dot_dimension_numbers<[1], [0], [0], [1], [0, 0, 1, 1], [], []>} : vector<16x16xf32>, vector<16x32xf32>, vector<16x32xf32> -> vector<16x32xf32>
    %114 = vector.broadcast %8 : vector<16x1xf32> to vector<16x32xf32>
    %115 = arith.addf %113, %114 : vector<16x32xf32>
    %c0_62 = arith.constant 0 : index
    %c0_63 = arith.constant 0 : index
    %116 = vector.load %arg20[%c0_62, %c0_63] : memref<16x32xf32, #tpu.memory_space<vmem>>, vector<16x32xf32>
    %c0_64 = arith.constant 0 : index
    %c0_65 = arith.constant 0 : index
    %117 = vector.load %arg21[%c0_64, %c0_65] : memref<1x16xf32, #tpu.memory_space<vmem>>, vector<1x16xf32>
    %118 = vector.extract_strided_slice %115 {offsets = [0, 0], sizes = [16, 16], strides = [1, 1]} : vector<16x32xf32> to vector<16x16xf32>
    %119 = vector.broadcast %117 : vector<1x16xf32> to vector<16x16xf32>
    %120 = arith.subf %118, %119 : vector<16x16xf32>
    %cst_66 = arith.constant dense<0.000000e+00> : vector<16x32xf32>
    %121 = tpu.matmul %120, %116, %cst_66 {dimension_numbers = #tpu.dot_dimension_numbers<[1], [0], [0], [1], [0, 0, 1, 1], [], []>} : vector<16x16xf32>, vector<16x32xf32>, vector<16x32xf32> -> vector<16x32xf32>
    %122 = vector.extract_strided_slice %115 {offsets = [0, 16], sizes = [16, 16], strides = [1, 1]} : vector<16x32xf32> to vector<16x16xf32>
    %123 = vector.broadcast %117 : vector<1x16xf32> to vector<16x16xf32>
    %124 = arith.subf %122, %123 : vector<16x16xf32>
    %cst_67 = arith.constant dense<0.000000e+00> : vector<16x32xf32>
    %125 = tpu.matmul %124, %116, %cst_67 {dimension_numbers = #tpu.dot_dimension_numbers<[1], [0], [0], [1], [0, 0, 1, 1], [], []>} : vector<16x16xf32>, vector<16x32xf32>, vector<16x32xf32> -> vector<16x32xf32>
    %126 = tpu.concatenate %121, %125 in 1 : vector<16x32xf32>, vector<16x32xf32> -> vector<16x64xf32>
    %cst_68 = arith.constant dense<0.000000e+00> : vector<16x64xf32>
    %127 = tpu.matmul %9, %126, %cst_68 {dimension_numbers = #tpu.dot_dimension_numbers<[1], [0], [0], [1], [0, 0, 1, 1], [], []>} : vector<16x16xf32>, vector<16x64xf32>, vector<16x64xf32> -> vector<16x64xf32>
    %cst_69 = arith.constant dense<0.000000e+00> : vector<16x64xf32>
    %128 = tpu.matmul %10, %60, %cst_69 {dimension_numbers = #tpu.dot_dimension_numbers<[1], [0], [0], [1], [0, 0, 1, 1], [], []>} : vector<16x16xf32>, vector<16x64xf32>, vector<16x64xf32> -> vector<16x64xf32>
    %129 = arith.addf %127, %128 : vector<16x64xf32>
    %130 = vector.broadcast %11 : vector<16x1xf32> to vector<16x64xf32>
    %131 = arith.addf %129, %130 : vector<16x64xf32>
    %cst_70 = arith.constant 0.000000e+00 : f32
    %132 = vector.broadcast %cst_70 : f32 to vector<16x64xf32>
    %133 = arith.maximumf %131, %132 : vector<16x64xf32>
    %cst_71 = arith.constant dense<0.000000e+00> : vector<16x64xf32>
    %134 = tpu.matmul %12, %133, %cst_71 {dimension_numbers = #tpu.dot_dimension_numbers<[1], [0], [0], [1], [0, 0, 1, 1], [], []>} : vector<16x16xf32>, vector<16x64xf32>, vector<16x64xf32> -> vector<16x64xf32>
    %135 = vector.broadcast %13 : vector<16x1xf32> to vector<16x64xf32>
    %136 = arith.addf %134, %135 : vector<16x64xf32>
    %cst_72 = arith.constant 0.000000e+00 : f32
    %137 = vector.broadcast %cst_72 : f32 to vector<16x64xf32>
    %138 = tpu.concatenate %136, %137 in 1 : vector<16x64xf32>, vector<16x64xf32> -> vector<16x128xf32>
    %c0_73 = arith.constant 0 : index
    %c0_74 = arith.constant 0 : index
    %139 = vector.load %arg22[%c0_73, %c0_74] : memref<16x128xf32, #tpu.memory_space<vmem>>, vector<16x128xf32>
    tpu.vector_store %arg22[%c0_73, %c0_74], %138 {strides = array<i32>} : memref<16x128xf32, #tpu.memory_space<vmem>>, vector<16x128xf32>,
    %cst_75 = arith.constant 0.000000e+00 : f32
    %140 = vector.broadcast %cst_75 : f32 to vector<16x96xf32>
    %141 = tpu.concatenate %115, %140 in 1 : vector<16x32xf32>, vector<16x96xf32> -> vector<16x128xf32>
    %c0_76 = arith.constant 0 : index
    %c0_77 = arith.constant 0 : index
    %142 = vector.load %arg23[%c0_76, %c0_77] : memref<16x128xf32, #tpu.memory_space<vmem>>, vector<16x128xf32>
    tpu.vector_store %arg23[%c0_76, %c0_77], %141 {strides = array<i32>} : memref<16x128xf32, #tpu.memory_space<vmem>>, vector<16x128xf32>,
    return
  }
}

</mosaic_0001>

<llo_original>
// kernel: tpu_custom_call.1
$region0: #{tpu_custom_call.1}
  #allocation0 [shape = 'u32[]', space=smem, size = 0x4, offset = 0x4, fixed_abs, tag = 'smem constant byte address 0x4 - core index']
  #allocation1 [shape = 'u32[144,128]{1,0:T(1,128)}', space=vmem, size = 0x12000, scoped, tag = 'internal scratch']
  %s0 = inlined_call_operand.vmem [shape: f32[16,3], index: 0, kind: input, shape index: {}]
  %s1 = inlined_call_operand.vmem [shape: f32[16,1], index: 1, kind: input, shape index: {}]
  %s2 = inlined_call_operand.vmem [shape: f32[16,16], index: 2, kind: input, shape index: {}]
  %s3 = inlined_call_operand.vmem [shape: f32[16,1], index: 3, kind: input, shape index: {}]
  %s4 = inlined_call_operand.vmem [shape: f32[16,16], index: 4, kind: input, shape index: {}]
  %s5 = inlined_call_operand.vmem [shape: f32[16,16], index: 5, kind: input, shape index: {}]
  %s6 = inlined_call_operand.vmem [shape: f32[16,1], index: 6, kind: input, shape index: {}]
  %s7 = inlined_call_operand.vmem [shape: f32[16,16], index: 7, kind: input, shape index: {}]
  %s8 = inlined_call_operand.vmem [shape: f32[16,1], index: 8, kind: input, shape index: {}]
  %s9 = inlined_call_operand.vmem [shape: f32[16,16], index: 9, kind: input, shape index: {}]
  %s10 = inlined_call_operand.vmem [shape: f32[16,16], index: 10, kind: input, shape index: {}]
  %s11 = inlined_call_operand.vmem [shape: f32[16,1], index: 11, kind: input, shape index: {}]
  %s12 = inlined_call_operand.vmem [shape: f32[16,16], index: 12, kind: input, shape index: {}]
  %s13 = inlined_call_operand.vmem [shape: f32[16,1], index: 13, kind: input, shape index: {}]
  %s14 = inlined_call_operand.vmem [shape: f32[1,64], index: 14, kind: input, shape index: {}]
  %s15 = inlined_call_operand.vmem [shape: f32[1,64], index: 15, kind: input, shape index: {}]
  %s16 = inlined_call_operand.vmem [shape: f32[1,64], index: 16, kind: input, shape index: {}]
  %s17 = inlined_call_operand.vmem [shape: f32[1,32], index: 17, kind: input, shape index: {}]
  %s18 = inlined_call_operand.vmem [shape: f32[1,32], index: 18, kind: input, shape index: {}]
  %s19 = inlined_call_operand.vmem [shape: f32[32,16], index: 19, kind: input, shape index: {}]
  %s20 = inlined_call_operand.vmem [shape: f32[16,32], index: 20, kind: input, shape index: {}]
  %s21 = inlined_call_operand.vmem [shape: f32[1,16], index: 21, kind: input, shape index: {}]
  %s22 = inlined_call_operand.hbm [shape: f32[16,128], index: 22, kind: output, shape index: {0}]
  %s23 = inlined_call_operand.hbm [shape: f32[16,128], index: 23, kind: output, shape index: {1}]
  %24 = xla_tuple %s22, %s23
  %s25 = sld [smem:[#allocation0]]
  $region106: #{tpu_custom_call.1} parent=0
    _
  %s27 = ssub.s32 1, %s25
  %s28 = scalar_select 0, %s27, %s25
  $region1: #{tpu_custom_call.1} parent=0
    #allocation2 [shape = 'u8[8192]{0}', space=vmem, size = 0x2000, scoped, tag = 'output window, operand 0, single buffered']
    #allocation3 [shape = 's32[1]{0}', space=sflag, size = 0x4, scoped, tag = 'scoped memory for tpu_custom_call.1']
    #allocation4 [shape = 'u8[8192]{0}', space=vmem, size = 0x2000, scoped, tag = 'output window, operand 1, single buffered']
    #allocation5 [shape = 's32[1]{0}', space=sflag, size = 0x4, scoped, tag = 'scoped memory for tpu_custom_call.1']
    %29 = vsyncpa [#allocation3], 0
    %30 = vsyncpa [#allocation5], 0
    // Predicated region
    $region2: #{tpu_custom_call.1} parent=1 // pred_check
      _
    $region3: #{tpu_custom_call.1} parent=1 // pred_check_branch
      %32 = sbr.rel (0) target = $region5
    $region4: #{tpu_custom_call.1} parent=1 // pred_region
      _
    $region5: #{tpu_custom_call.1} parent=1 // pred_fallthru
      _
    // Predicated region
    $region6: #{tpu_custom_call.1} parent=1 // pred_check
      _
    $region7: #{tpu_custom_call.1} parent=1 // pred_check_branch
      %34 = sbr.rel (0) target = $region9
    $region8: #{tpu_custom_call.1} parent=1 // pred_region
      _
    $region9: #{tpu_custom_call.1} parent=1 // pred_fallthru
      _
    // Predicated region
    $region10: #{tpu_custom_call.1} parent=1 // pred_check
      _
    $region11: #{tpu_custom_call.1} parent=1 // pred_check_branch
      %36 = sbr.rel (0) target = $region13
    $region12: #{tpu_custom_call.1} parent=1 // pred_region
      _
    $region13: #{tpu_custom_call.1} parent=1 // pred_fallthru
      _
    // Predicated region
    $region14: #{tpu_custom_call.1} parent=1 // pred_check
      _
    $region15: #{tpu_custom_call.1} parent=1 // pred_check_branch
      %38 = sbr.rel (0) target = $region17
    $region16: #{tpu_custom_call.1} parent=1 // pred_region
      _
    $region17: #{tpu_custom_call.1} parent=1 // pred_fallthru
      _
    // Predicated region
    $region18: #{tpu_custom_call.1} parent=1 // pred_check
      _
    $region19: #{tpu_custom_call.1} parent=1 // pred_check_branch
      %40 = sbr.rel (0) target = $region21
    $region20: #{tpu_custom_call.1} parent=1 // pred_region
      _
    $region21: #{tpu_custom_call.1} parent=1 // pred_fallthru
      _
    // Predicated region
    $region22: #{tpu_custom_call.1} parent=1 // pred_check
      _
    $region23: #{tpu_custom_call.1} parent=1 // pred_check_branch
      %42 = sbr.rel (0) target = $region25
    $region24: #{tpu_custom_call.1} parent=1 // pred_region
      _
    $region25: #{tpu_custom_call.1} parent=1 // pred_fallthru
      _
    // Predicated region
    $region26: #{tpu_custom_call.1} parent=1 // pred_check
      _
    $region27: #{tpu_custom_call.1} parent=1 // pred_check_branch
      %44 = sbr.rel (0) target = $region29
    $region28: #{tpu_custom_call.1} parent=1 // pred_region
      _
    $region29: #{tpu_custom_call.1} parent=1 // pred_fallthru
      _
    // Predicated region
    $region30: #{tpu_custom_call.1} parent=1 // pred_check
      _
    $region31: #{tpu_custom_call.1} parent=1 // pred_check_branch
      %46 = sbr.rel (0) target = $region33
    $region32: #{tpu_custom_call.1} parent=1 // pred_region
      _
    $region33: #{tpu_custom_call.1} parent=1 // pred_fallthru
      _
    // Predicated region
    $region34: #{tpu_custom_call.1} parent=1 // pred_check
      _
    $region35: #{tpu_custom_call.1} parent=1 // pred_check_branch
      %48 = sbr.rel (0) target = $region37
    $region36: #{tpu_custom_call.1} parent=1 // pred_region
      _
    $region37: #{tpu_custom_call.1} parent=1 // pred_fallthru
      _
    // Predicated region
    $region38: #{tpu_custom_call.1} parent=1 // pred_check
      _
    $region39: #{tpu_custom_call.1} parent=1 // pred_check_branch
      %50 = sbr.rel (0) target = $region41
    $region40: #{tpu_custom_call.1} parent=1 // pred_region
      _
    $region41: #{tpu_custom_call.1} parent=1 // pred_fallthru
      _
    // Predicated region
    $region42: #{tpu_custom_call.1} parent=1 // pred_check
      _
    $region43: #{tpu_custom_call.1} parent=1 // pred_check_branch
      %52 = sbr.rel (0) target = $region45
    $region44: #{tpu_custom_call.1} parent=1 // pred_region
      _
    $region45: #{tpu_custom_call.1} parent=1 // pred_fallthru
      _
    // Predicated region
    $region46: #{tpu_custom_call.1} parent=1 // pred_check
      _
    $region47: #{tpu_custom_call.1} parent=1 // pred_check_branch
      %54 = sbr.rel (0) target = $region49
    $region48: #{tpu_custom_call.1} parent=1 // pred_region
      _
    $region49: #{tpu_custom_call.1} parent=1 // pred_fallthru
      _
    // Predicated region
    $region50: #{tpu_custom_call.1} parent=1 // pred_check
      _
    $region51: #{tpu_custom_call.1} parent=1 // pred_check_branch
      %56 = sbr.rel (0) target = $region53
    $region52: #{tpu_custom_call.1} parent=1 // pred_region
      _
    $region53: #{tpu_custom_call.1} parent=1 // pred_fallthru
      _
    // Predicated region
    $region54: #{tpu_custom_call.1} parent=1 // pred_check
      _
    $region55: #{tpu_custom_call.1} parent=1 // pred_check_branch
      %58 = sbr.rel (0) target = $region57
    $region56: #{tpu_custom_call.1} parent=1 // pred_region
      _
    $region57: #{tpu_custom_call.1} parent=1 // pred_fallthru
      _
    // Predicated region
    $region58: #{tpu_custom_call.1} parent=1 // pred_check
      _
    $region59: #{tpu_custom_call.1} parent=1 // pred_check_branch
      %60 = sbr.rel (0) target = $region61
    $region60: #{tpu_custom_call.1} parent=1 // pred_region
      _
    $region61: #{tpu_custom_call.1} parent=1 // pred_fallthru
      _
    // Predicated region
    $region62: #{tpu_custom_call.1} parent=1 // pred_check
      _
    $region63: #{tpu_custom_call.1} parent=1 // pred_check_branch
      %62 = sbr.rel (0) target = $region65
    $region64: #{tpu_custom_call.1} parent=1 // pred_region
      _
    $region65: #{tpu_custom_call.1} parent=1 // pred_fallthru
      _
    // Predicated region
    $region66: #{tpu_custom_call.1} parent=1 // pred_check
      _
    $region67: #{tpu_custom_call.1} parent=1 // pred_check_branch
      %64 = sbr.rel (0) target = $region69
    $region68: #{tpu_custom_call.1} parent=1 // pred_region
      _
    $region69: #{tpu_custom_call.1} parent=1 // pred_fallthru
      _
    // Predicated region
    $region70: #{tpu_custom_call.1} parent=1 // pred_check
      _
    $region71: #{tpu_custom_call.1} parent=1 // pred_check_branch
      %66 = sbr.rel (0) target = $region73
    $region72: #{tpu_custom_call.1} parent=1 // pred_region
      _
    $region73: #{tpu_custom_call.1} parent=1 // pred_fallthru
      _
    // Predicated region
    $region74: #{tpu_custom_call.1} parent=1 // pred_check
      _
    $region75: #{tpu_custom_call.1} parent=1 // pred_check_branch
      %68 = sbr.rel (0) target = $region77
    $region76: #{tpu_custom_call.1} parent=1 // pred_region
      _
    $region77: #{tpu_custom_call.1} parent=1 // pred_fallthru
      _
    // Predicated region
    $region78: #{tpu_custom_call.1} parent=1 // pred_check
      _
    $region79: #{tpu_custom_call.1} parent=1 // pred_check_branch
      %70 = sbr.rel (0) target = $region81
    $region80: #{tpu_custom_call.1} parent=1 // pred_region
      _
    $region81: #{tpu_custom_call.1} parent=1 // pred_fallthru
      _
    // Predicated region
    $region82: #{tpu_custom_call.1} parent=1 // pred_check
      _
    $region83: #{tpu_custom_call.1} parent=1 // pred_check_branch
      %72 = sbr.rel (0) target = $region85
    $region84: #{tpu_custom_call.1} parent=1 // pred_region
      _
    $region85: #{tpu_custom_call.1} parent=1 // pred_fallthru
      _
    // Predicated region
    $region86: #{tpu_custom_call.1} parent=1 // pred_check
      _
    $region87: #{tpu_custom_call.1} parent=1 // pred_check_branch
      %74 = sbr.rel (0) target = $region89
    $region88: #{tpu_custom_call.1} parent=1 // pred_region
      _
    $region89: #{tpu_custom_call.1} parent=1 // pred_fallthru
      _
    %v75 = vld [vmem:[%s0] sm:$0xff]
    %v76 = vld [vmem:[%s0 + $0x8] sm:$0xff]
    %v77 = vld [vmem:[%s1] sm:$0xff]
    %v78 = vld [vmem:[%s1 + $0x8] sm:$0xff]
    %v79 = vld [vmem:[%s2] sm:$0xff]
    %v80 = vld [vmem:[%s2 + $0x8] sm:$0xff]
    %v81 = vld [vmem:[%s3] sm:$0xff]
    %v82 = vld [vmem:[%s3 + $0x8] sm:$0xff]
    %v83 = vld [vmem:[%s4] sm:$0xff]
    %v84 = vld [vmem:[%s4 + $0x8] sm:$0xff]
    %v85 = vld [vmem:[%s5] sm:$0xff]
    %v86 = vld [vmem:[%s5 + $0x8] sm:$0xff]
    %v87 = vld [vmem:[%s6] sm:$0xff]
    %v88 = vld [vmem:[%s6 + $0x8] sm:$0xff]
    %v89 = vld [vmem:[%s7] sm:$0xff]
    %v90 = vld [vmem:[%s7 + $0x8] sm:$0xff]
    %v91 = vld [vmem:[%s8] sm:$0xff]
    %v92 = vld [vmem:[%s8 + $0x8] sm:$0xff]
    %v93 = vld [vmem:[%s9] sm:$0xff]
    %v94 = vld [vmem:[%s9 + $0x8] sm:$0xff]
    %v95 = vld [vmem:[%s10] sm:$0xff]
    %v96 = vld [vmem:[%s10 + $0x8] sm:$0xff]
    %v97 = vld [vmem:[%s11] sm:$0xff]
    %v98 = vld [vmem:[%s11 + $0x8] sm:$0xff]
    %v99 = vld [vmem:[%s12] sm:$0xff]
    %v100 = vld [vmem:[%s12 + $0x8] sm:$0xff]
    %v101 = vld [vmem:[%s13] sm:$0xff]
    %v102 = vld [vmem:[%s13 + $0x8] sm:$0xff]
    %v103 = vld [vmem:[%s16] sm:$0x1]
    %v105 = vlaneseq
    %v106 = vshrl.u32 %v105, 7
    %v107 = vsub.s32 0, %v106
    %v108 = vrot.slane %v103, %v107
    %v110 = vld [vmem:[%s14] sm:$0x1]
    %v111 = vld [vmem:[%s15] sm:$0x1]
    %v112 = vmax.f32 %v110, 0.0
    %v113 = vsub.f32 %v110, %v112
    %v114 = vmax.f32 %v111, 0.0
    %v115 = vsub.f32 %v114, %v113
    %v116 = vadd.f32 %v115, 1e-08
    %v117 = vrcp.pop %v116
    %v118 = vmul.f32 %v114, %v117
    %v119 = vsub.f32 1.0, %v118
    %121 = vset.pattern.permute.xlu0 0
    %122 = vperm.xlu0 %121, %v75
    %v123 = vpop.permute.xlu0 %122
    %126 = vset.pattern.permute.xlu0 0
    %127 = vperm.xlu0 %126, %v76
    %v128 = vpop.permute.xlu0 %127
    %v131 = vlaneseq
    %v132 = vshrl.u32 %v131, 7
    %v133 = vsub.s32 0, %v132
    %v134 = vrot.slane %v118, %v133
    %v136 = vmul.f32 %v123, %v134
    %v137 = vmul.f32 %v128, %v134
    %138 = vset.pattern.permute.xlu0 1
    %139 = vperm.xlu0 %138, %v75
    %v140 = vpop.permute.xlu0 %139
    %142 = vset.pattern.permute.xlu0 1
    %143 = vperm.xlu0 %142, %v76
    %v144 = vpop.permute.xlu0 %143
    %v147 = vlaneseq
    %v148 = vshrl.u32 %v147, 7
    %v149 = vsub.s32 0, %v148
    %v150 = vrot.slane %v119, %v149
    %v152 = vmul.f32 %v140, %v150
    %v153 = vmul.f32 %v144, %v150
    %v154 = vadd.f32 %v136, %v152
    %v155 = vadd.f32 %v137, %v153
    %156 = vset.pattern.permute.xlu0 2
    %157 = vperm.xlu0 %156, %v75
    %v158 = vpop.permute.xlu0 %157
    %160 = vset.pattern.permute.xlu0 2
    %161 = vperm.xlu0 %160, %v76
    %v162 = vpop.permute.xlu0 %161
    %v165 = vlaneseq
    %v166 = vshrl.u32 %v165, 7
    %v167 = vsub.s32 0, %v166
    %v168 = vrot.slane %v115, %v167
    %v170 = vmul.f32 %v158, %v168
    %v171 = vmul.f32 %v162, %v168
    %v172 = vadd.f32 %v154, %v170
    %v173 = vadd.f32 %v155, %v171
    %175 = vset.pattern.permute.xlu0 0
    %176 = vperm.xlu0 %175, %v77
    %v177 = vpop.permute.xlu0 %176
    %180 = vset.pattern.permute.xlu0 0
    %181 = vperm.xlu0 %180, %v78
    %v182 = vpop.permute.xlu0 %181
    %v184 = vadd.f32 %v172, %v177
    %v185 = vadd.f32 %v173, %v182
    %v186 = vmax.f32 %v184, 0.0
    %v187 = vmax.f32 %v185, 0.0
    %189 = vset.pattern.permute.xlu0 0
    %190 = vperm.xlu0 %189, %v81
    %v191 = vpop.permute.xlu0 %190
    %194 = vset.pattern.permute.xlu0 0
    %195 = vperm.xlu0 %194, %v82
    %v196 = vpop.permute.xlu0 %195
    %vm198 = vcmask 130048
    %v200 = vsel %vm198, %v79, 0
    %v203 = vsel %vm198, %v80, 0
    %205 = vmatprep.subr.mxu0 0.0
    %206 = vmatpush1.msra.mxu0 %v186
    %207 = vmatprep.subr.mxu0 0.0
    %208 = vmatpush1.msra.mxu0 %v187
    %209 = vmatprep.subr.mxu0 0.0
    %210 = vmatpush1.msra.mxu0 0.0
    %211 = vmatprep.subr.mxu0 0.0
    %212 = vmatpush1.msra.mxu0 0.0
    %213 = vmatprep.subr.mxu0 0.0
    %214 = vmatpush1.msra.mxu0 0.0
    %215 = vmatprep.subr.mxu0 0.0
    %216 = vmatpush1.msra.mxu0 0.0
    %217 = vmatprep.subr.mxu0 0.0
    %218 = vmatpush1.msra.mxu0 0.0
    %219 = vmatprep.subr.mxu0 0.0
    %220 = vmatpush1.msra.mxu0 0.0
    %221 = vmatprep.subr.mxu0 0.0
    %222 = vmatpush1.msra.mxu0 0.0
    %223 = vmatprep.subr.mxu0 0.0
    %224 = vmatpush1.msra.mxu0 0.0
    %225 = vmatprep.subr.mxu0 0.0
    %226 = vmatpush1.msra.mxu0 0.0
    %227 = vmatprep.subr.mxu0 0.0
    %228 = vmatpush1.msra.mxu0 0.0
    %229 = vmatprep.subr.mxu0 0.0
    %230 = vmatpush1.msra.mxu0 0.0
    %231 = vmatprep.subr.mxu0 0.0
    %232 = vmatpush1.msra.mxu0 0.0
    %233 = vmatprep.subr.mxu0 0.0
    %234 = vmatpush1.msra.mxu0 0.0
    %235 = vmatprep.subr.mxu0 0.0
    %236 = vmatpush1.msra.mxu0 0.0
    %237 = vmatprep.subr.mxu0 0.0
    %238 = vmatpush1.msra.mxu0 0.0
    %239 = vmatprep.subr.mxu0 0.0
    %240 = vmatpush1.msra.mxu0 0.0
    %241 = vmatprep.subr.mxu0 0.0
    %242 = vmatpush1.msra.mxu0 0.0
    %243 = vmatprep.subr.mxu0 0.0
    %244 = vmatpush1.msra.mxu0 0.0
    %245 = vmatprep.subr.mxu0 0.0
    %246 = vmatpush1.msra.mxu0 0.0
    %247 = vmatprep.subr.mxu0 0.0
    %248 = vmatpush1.msra.mxu0 0.0
    %249 = vmatprep.subr.mxu0 0.0
    %250 = vmatpush1.msra.mxu0 0.0
    %251 = vmatprep.subr.mxu0 0.0
    %252 = vmatpush1.msra.mxu0 0.0
    %253 = vmatprep.subr.mxu0 0.0
    %254 = vmatpush1.msra.mxu0 0.0
    %255 = vmatprep.subr.mxu0 0.0
    %256 = vmatpush1.msra.mxu0 0.0
    %257 = vmatprep.subr.mxu0 0.0
    %258 = vmatpush1.msra.mxu0 0.0
    %259 = vmatprep.subr.mxu0 0.0
    %260 = vmatpush1.msra.mxu0 0.0
    %261 = vmatprep.subr.mxu0 0.0
    %262 = vmatpush1.msra.mxu0 0.0
    %263 = vmatprep.subr.mxu0 0.0
    %264 = vmatpush1.msra.mxu0 0.0
    %265 = vmatprep.subr.mxu0 0.0
    %266 = vmatpush1.msra.mxu0 0.0
    %267 = vmatprep.subr.mxu0 0.0
    %268 = vmatpush1.msra.mxu0 0.0
    %269 = vmatprep.mubr.f32.mxu0 0.0
    %270 = vmatmul.mubr.f32.gmra.mrb[0].mxu0 %v200
    %v271 = vpop.f32.mrb[0].mxu0
    %v272 = vadd.f32 %v191, %v271
    %v273 = vpop.f32.mrb[0].mxu0
    %274 = vmatprep.mubr.f32.mxu0 0.0
    %275 = vmatmul.mubr.f32.gmra.mrb[0].mxu0 %v203
    %v276 = vpop.f32.mrb[0].mxu0
    %v277 = vadd.f32 %v196, %v276
    %v278 = vpop.f32.mrb[0].mxu0
    %279 = vdwg.mxu0
    %v281 = vsel %vm198, %v85, 0
    %v284 = vsel %vm198, %v86, 0
    %286 = vmatprep.subr.mxu0 0.0
    %287 = vmatpush1.msra.mxu0 %v272
    %288 = vmatprep.subr.mxu0 0.0
    %289 = vmatpush1.msra.mxu0 %v277
    %290 = vmatprep.subr.mxu0 0.0
    %291 = vmatpush1.msra.mxu0 0.0
    %292 = vmatprep.subr.mxu0 0.0
    %293 = vmatpush1.msra.mxu0 0.0
    %294 = vmatprep.subr.mxu0 0.0
    %295 = vmatpush1.msra.mxu0 0.0
    %296 = vmatprep.subr.mxu0 0.0
    %297 = vmatpush1.msra.mxu0 0.0
    %298 = vmatprep.subr.mxu0 0.0
    %299 = vmatpush1.msra.mxu0 0.0
    %300 = vmatprep.subr.mxu0 0.0
    %301 = vmatpush1.msra.mxu0 0.0
    %302 = vmatprep.subr.mxu0 0.0
    %303 = vmatpush1.msra.mxu0 0.0
    %304 = vmatprep.subr.mxu0 0.0
    %305 = vmatpush1.msra.mxu0 0.0
    %306 = vmatprep.subr.mxu0 0.0
    %307 = vmatpush1.msra.mxu0 0.0
    %308 = vmatprep.subr.mxu0 0.0
    %309 = vmatpush1.msra.mxu0 0.0
    %310 = vmatprep.subr.mxu0 0.0
    %311 = vmatpush1.msra.mxu0 0.0
    %312 = vmatprep.subr.mxu0 0.0
    %313 = vmatpush1.msra.mxu0 0.0
    %314 = vmatprep.subr.mxu0 0.0
    %315 = vmatpush1.msra.mxu0 0.0
    %316 = vmatprep.subr.mxu0 0.0
    %317 = vmatpush1.msra.mxu0 0.0
    %318 = vmatprep.subr.mxu0 0.0
    %319 = vmatpush1.msra.mxu0 0.0
    %320 = vmatprep.subr.mxu0 0.0
    %321 = vmatpush1.msra.mxu0 0.0
    %322 = vmatprep.subr.mxu0 0.0
    %323 = vmatpush1.msra.mxu0 0.0
    %324 = vmatprep.subr.mxu0 0.0
    %325 = vmatpush1.msra.mxu0 0.0
    %326 = vmatprep.subr.mxu0 0.0
    %327 = vmatpush1.msra.mxu0 0.0
    %328 = vmatprep.subr.mxu0 0.0
    %329 = vmatpush1.msra.mxu0 0.0
    %330 = vmatprep.subr.mxu0 0.0
    %331 = vmatpush1.msra.mxu0 0.0
    %332 = vmatprep.subr.mxu0 0.0
    %333 = vmatpush1.msra.mxu0 0.0
    %334 = vmatprep.subr.mxu0 0.0
    %335 = vmatpush1.msra.mxu0 0.0
    %336 = vmatprep.subr.mxu0 0.0
    %337 = vmatpush1.msra.mxu0 0.0
    %338 = vmatprep.subr.mxu0 0.0
    %339 = vmatpush1.msra.mxu0 0.0
    %340 = vmatprep.subr.mxu0 0.0
    %341 = vmatpush1.msra.mxu0 0.0
    %342 = vmatprep.subr.mxu0 0.0
    %343 = vmatpush1.msra.mxu0 0.0
    %344 = vmatprep.subr.mxu0 0.0
    %345 = vmatpush1.msra.mxu0 0.0
    %346 = vmatprep.subr.mxu0 0.0
    %347 = vmatpush1.msra.mxu0 0.0
    %348 = vmatprep.subr.mxu0 0.0
    %349 = vmatpush1.msra.mxu0 0.0
    %350 = vmatprep.mubr.f32.mxu0 0.0
    %351 = vmatmul.mubr.f32.gmra.mrb[0].mxu0 %v281
    %v352 = vpop.f32.mrb[0].mxu0
    %v353 = vadd.f32 0.0, %v352
    %v354 = vpop.f32.mrb[0].mxu0
    %355 = vmatprep.mubr.f32.mxu0 0.0
    %356 = vmatmul.mubr.f32.gmra.mrb[0].mxu0 %v284
    %v357 = vpop.f32.mrb[0].mxu0
    %v358 = vadd.f32 0.0, %v357
    %v359 = vpop.f32.mrb[0].mxu0
    %360 = vdwg.mxu0
    %v362 = vsel %vm198, %v83, 0
    %v365 = vsel %vm198, %v84, 0
    %367 = vmatprep.subr.mxu0 0.0
    %368 = vmatpush1.msra.mxu0 %v108
    %369 = vmatprep.subr.mxu0 0.0
    %370 = vmatpush1.msra.mxu0 %v108
    %371 = vmatprep.subr.mxu0 0.0
    %372 = vmatpush1.msra.mxu0 0.0
    %373 = vmatprep.subr.mxu0 0.0
    %374 = vmatpush1.msra.mxu0 0.0
    %375 = vmatprep.subr.mxu0 0.0
    %376 = vmatpush1.msra.mxu0 0.0
    %377 = vmatprep.subr.mxu0 0.0
    %378 = vmatpush1.msra.mxu0 0.0
    %379 = vmatprep.subr.mxu0 0.0
    %380 = vmatpush1.msra.mxu0 0.0
    %381 = vmatprep.subr.mxu0 0.0
    %382 = vmatpush1.msra.mxu0 0.0
    %383 = vmatprep.subr.mxu0 0.0
    %384 = vmatpush1.msra.mxu0 0.0
    %385 = vmatprep.subr.mxu0 0.0
    %386 = vmatpush1.msra.mxu0 0.0
    %387 = vmatprep.subr.mxu0 0.0
    %388 = vmatpush1.msra.mxu0 0.0
    %389 = vmatprep.subr.mxu0 0.0
    %390 = vmatpush1.msra.mxu0 0.0
    %391 = vmatprep.subr.mxu0 0.0
    %392 = vmatpush1.msra.mxu0 0.0
    %393 = vmatprep.subr.mxu0 0.0
    %394 = vmatpush1.msra.mxu0 0.0
    %395 = vmatprep.subr.mxu0 0.0
    %396 = vmatpush1.msra.mxu0 0.0
    %397 = vmatprep.subr.mxu0 0.0
    %398 = vmatpush1.msra.mxu0 0.0
    %399 = vmatprep.subr.mxu0 0.0
    %400 = vmatpush1.msra.mxu0 0.0
    %401 = vmatprep.subr.mxu0 0.0
    %402 = vmatpush1.msra.mxu0 0.0
    %403 = vmatprep.subr.mxu0 0.0
    %404 = vmatpush1.msra.mxu0 0.0
    %405 = vmatprep.subr.mxu0 0.0
    %406 = vmatpush1.msra.mxu0 0.0
    %407 = vmatprep.subr.mxu0 0.0
    %408 = vmatpush1.msra.mxu0 0.0
    %409 = vmatprep.subr.mxu0 0.0
    %410 = vmatpush1.msra.mxu0 0.0
    %411 = vmatprep.subr.mxu0 0.0
    %412 = vmatpush1.msra.mxu0 0.0
    %413 = vmatprep.subr.mxu0 0.0
    %414 = vmatpush1.msra.mxu0 0.0
    %415 = vmatprep.subr.mxu0 0.0
    %416 = vmatpush1.msra.mxu0 0.0
    %417 = vmatprep.subr.mxu0 0.0
    %418 = vmatpush1.msra.mxu0 0.0
    %419 = vmatprep.subr.mxu0 0.0
    %420 = vmatpush1.msra.mxu0 0.0
    %421 = vmatprep.subr.mxu0 0.0
    %422 = vmatpush1.msra.mxu0 0.0
    %423 = vmatprep.subr.mxu0 0.0
    %424 = vmatpush1.msra.mxu0 0.0
    %425 = vmatprep.subr.mxu0 0.0
    %426 = vmatpush1.msra.mxu0 0.0
    %427 = vmatprep.subr.mxu0 0.0
    %428 = vmatpush1.msra.mxu0 0.0
    %429 = vmatprep.subr.mxu0 0.0
    %430 = vmatpush1.msra.mxu0 0.0
    %431 = vmatprep.mubr.f32.mxu0 0.0
    %432 = vmatmul.mubr.f32.gmra.mrb[0].mxu0 %v362
    %v433 = vpop.f32.mrb[0].mxu0
    %v434 = vadd.f32 %v353, %v433
    %v435 = vpop.f32.mrb[0].mxu0
    %436 = vmatprep.mubr.f32.mxu0 0.0
    %437 = vmatmul.mubr.f32.gmra.mrb[0].mxu0 %v365
    %v438 = vpop.f32.mrb[0].mxu0
    %v439 = vadd.f32 %v358, %v438
    %v440 = vpop.f32.mrb[0].mxu0
    %441 = vdwg.mxu0
    %443 = vset.pattern.permute.xlu0 0
    %444 = vperm.xlu0 %443, %v87
    %v445 = vpop.permute.xlu0 %444
    %448 = vset.pattern.permute.xlu0 0
    %449 = vperm.xlu0 %448, %v88
    %v450 = vpop.permute.xlu0 %449
    %v452 = vadd.f32 %v434, %v445
    %v453 = vadd.f32 %v439, %v450
    %v454 = vmax.f32 %v452, 0.0
    %v455 = vmax.f32 %v453, 0.0
    %457 = vset.pattern.permute.xlu0 0
    %458 = vperm.xlu0 %457, %v91
    %v459 = vpop.permute.xlu0 %458
    %462 = vset.pattern.permute.xlu0 0
    %463 = vperm.xlu0 %462, %v92
    %v464 = vpop.permute.xlu0 %463
    %v467 = vsel %vm198, %v89, 0
    %v470 = vsel %vm198, %v90, 0
    %472 = vmatprep.subr.mxu0 0.0
    %473 = vmatpush1.msra.mxu0 %v454
    %474 = vmatprep.subr.mxu0 0.0
    %475 = vmatpush1.msra.mxu0 %v455
    %476 = vmatprep.subr.mxu0 0.0
    %477 = vmatpush1.msra.mxu0 0.0
    %478 = vmatprep.subr.mxu0 0.0
    %479 = vmatpush1.msra.mxu0 0.0
    %480 = vmatprep.subr.mxu0 0.0
    %481 = vmatpush1.msra.mxu0 0.0
    %482 = vmatprep.subr.mxu0 0.0
    %483 = vmatpush1.msra.mxu0 0.0
    %484 = vmatprep.subr.mxu0 0.0
    %485 = vmatpush1.msra.mxu0 0.0
    %486 = vmatprep.subr.mxu0 0.0
    %487 = vmatpush1.msra.mxu0 0.0
    %488 = vmatprep.subr.mxu0 0.0
    %489 = vmatpush1.msra.mxu0 0.0
    %490 = vmatprep.subr.mxu0 0.0
    %491 = vmatpush1.msra.mxu0 0.0
    %492 = vmatprep.subr.mxu0 0.0
    %493 = vmatpush1.msra.mxu0 0.0
    %494 = vmatprep.subr.mxu0 0.0
    %495 = vmatpush1.msra.mxu0 0.0
    %496 = vmatprep.subr.mxu0 0.0
    %497 = vmatpush1.msra.mxu0 0.0
    %498 = vmatprep.subr.mxu0 0.0
    %499 = vmatpush1.msra.mxu0 0.0
    %500 = vmatprep.subr.mxu0 0.0
    %501 = vmatpush1.msra.mxu0 0.0
    %502 = vmatprep.subr.mxu0 0.0
    %503 = vmatpush1.msra.mxu0 0.0
    %504 = vmatprep.subr.mxu0 0.0
    %505 = vmatpush1.msra.mxu0 0.0
    %506 = vmatprep.subr.mxu0 0.0
    %507 = vmatpush1.msra.mxu0 0.0
    %508 = vmatprep.subr.mxu0 0.0
    %509 = vmatpush1.msra.mxu0 0.0
    %510 = vmatprep.subr.mxu0 0.0
    %511 = vmatpush1.msra.mxu0 0.0
    %512 = vmatprep.subr.mxu0 0.0
    %513 = vmatpush1.msra.mxu0 0.0
    %514 = vmatprep.subr.mxu0 0.0
    %515 = vmatpush1.msra.mxu0 0.0
    %516 = vmatprep.subr.mxu0 0.0
    %517 = vmatpush1.msra.mxu0 0.0
    %518 = vmatprep.subr.mxu0 0.0
    %519 = vmatpush1.msra.mxu0 0.0
    %520 = vmatprep.subr.mxu0 0.0
    %521 = vmatpush1.msra.mxu0 0.0
    %522 = vmatprep.subr.mxu0 0.0
    %523 = vmatpush1.msra.mxu0 0.0
    %524 = vmatprep.subr.mxu0 0.0
    %525 = vmatpush1.msra.mxu0 0.0
    %526 = vmatprep.subr.mxu0 0.0
    %527 = vmatpush1.msra.mxu0 0.0
    %528 = vmatprep.subr.mxu0 0.0
    %529 = vmatpush1.msra.mxu0 0.0
    %530 = vmatprep.subr.mxu0 0.0
    %531 = vmatpush1.msra.mxu0 0.0
    %532 = vmatprep.subr.mxu0 0.0
    %533 = vmatpush1.msra.mxu0 0.0
    %534 = vmatprep.subr.mxu0 0.0
    %535 = vmatpush1.msra.mxu0 0.0
    %536 = vmatprep.mubr.f32.mxu0 0.0
    %537 = vmatmul.mubr.f32.gmra.mrb[0].mxu0 %v467
    %v538 = vpop.f32.mrb[0].mxu0
    %v539 = vadd.f32 %v459, %v538
    %v540 = vpop.f32.mrb[0].mxu0
    %541 = vmatprep.mubr.f32.mxu0 0.0
    %542 = vmatmul.mubr.f32.gmra.mrb[0].mxu0 %v470
    %v543 = vpop.f32.mrb[0].mxu0
    %v544 = vadd.f32 %v464, %v543
    %v545 = vpop.f32.mrb[0].mxu0
    %546 = vdwg.mxu0
    %v547 = vld [vmem:[%s19] sm:$0xff]
    %v548 = vld [vmem:[%s19 + $0x8] sm:$0xff]
    %v549 = vld [vmem:[%s19 + $0x10] sm:$0xff]
    %v550 = vld [vmem:[%s19 + $0x18] sm:$0xff]
    %v551 = vld [vmem:[%s21] sm:$0x1]
    %v553 = vlaneseq
    %v554 = vshrl.u32 %v553, 7
    %v555 = vsub.s32 0, %v554
    %v556 = vrot.slane %v551, %v555
    %vm558 = vcmask 261120
    %v560 = vsel %vm558, %v539, 0
    %v563 = vsel %vm558, %v544, 0
    %565 = vmatprep.subr.mxu0 0.0
    %566 = vmatpush1.msra.mxu0 %v547
    %567 = vmatprep.subr.mxu0 0.0
    %568 = vmatpush1.msra.mxu0 %v548
    %569 = vmatprep.subr.mxu0 0.0
    %570 = vmatpush1.msra.mxu0 %v549
    %571 = vmatprep.subr.mxu0 0.0
    %572 = vmatpush1.msra.mxu0 %v550
    %573 = vmatprep.subr.mxu0 0.0
    %574 = vmatpush1.msra.mxu0 0.0
    %575 = vmatprep.subr.mxu0 0.0
    %576 = vmatpush1.msra.mxu0 0.0
    %577 = vmatprep.subr.mxu0 0.0
    %578 = vmatpush1.msra.mxu0 0.0
    %579 = vmatprep.subr.mxu0 0.0
    %580 = vmatpush1.msra.mxu0 0.0
    %581 = vmatprep.subr.mxu0 0.0
    %582 = vmatpush1.msra.mxu0 0.0
    %583 = vmatprep.subr.mxu0 0.0
    %584 = vmatpush1.msra.mxu0 0.0
    %585 = vmatprep.subr.mxu0 0.0
    %586 = vmatpush1.msra.mxu0 0.0
    %587 = vmatprep.subr.mxu0 0.0
    %588 = vmatpush1.msra.mxu0 0.0
    %589 = vmatprep.subr.mxu0 0.0
    %590 = vmatpush1.msra.mxu0 0.0
    %591 = vmatprep.subr.mxu0 0.0
    %592 = vmatpush1.msra.mxu0 0.0
    %593 = vmatprep.subr.mxu0 0.0
    %594 = vmatpush1.msra.mxu0 0.0
    %595 = vmatprep.subr.mxu0 0.0
    %596 = vmatpush1.msra.mxu0 0.0
    %597 = vmatprep.subr.mxu0 0.0
    %598 = vmatpush1.msra.mxu0 0.0
    %599 = vmatprep.subr.mxu0 0.0
    %600 = vmatpush1.msra.mxu0 0.0
    %601 = vmatprep.subr.mxu0 0.0
    %602 = vmatpush1.msra.mxu0 0.0
    %603 = vmatprep.subr.mxu0 0.0
    %604 = vmatpush1.msra.mxu0 0.0
    %605 = vmatprep.subr.mxu0 0.0
    %606 = vmatpush1.msra.mxu0 0.0
    %607 = vmatprep.subr.mxu0 0.0
    %608 = vmatpush1.msra.mxu0 0.0
    %609 = vmatprep.subr.mxu0 0.0
    %610 = vmatpush1.msra.mxu0 0.0
    %611 = vmatprep.subr.mxu0 0.0
    %612 = vmatpush1.msra.mxu0 0.0
    %613 = vmatprep.subr.mxu0 0.0
    %614 = vmatpush1.msra.mxu0 0.0
    %615 = vmatprep.subr.mxu0 0.0
    %616 = vmatpush1.msra.mxu0 0.0
    %617 = vmatprep.subr.mxu0 0.0
    %618 = vmatpush1.msra.mxu0 0.0
    %619 = vmatprep.subr.mxu0 0.0
    %620 = vmatpush1.msra.mxu0 0.0
    %621 = vmatprep.subr.mxu0 0.0
    %622 = vmatpush1.msra.mxu0 0.0
    %623 = vmatprep.subr.mxu0 0.0
    %624 = vmatpush1.msra.mxu0 0.0
    %625 = vmatprep.subr.mxu0 0.0
    %626 = vmatpush1.msra.mxu0 0.0
    %627 = vmatprep.subr.mxu0 0.0
    %628 = vmatpush1.msra.mxu0 0.0
    %629 = vmatprep.mubr.f32.mxu0 0.0
    %630 = vmatmul.mubr.f32.gmra.mrb[0].mxu0 %v560
    %v631 = vpop.f32.mrb[0].mxu0
    %v632 = vadd.f32 %v556, %v631
    %v633 = vpop.f32.mrb[0].mxu0
    %634 = vmatprep.mubr.f32.mxu0 0.0
    %635 = vmatmul.mubr.f32.gmra.mrb[0].mxu0 %v563
    %v636 = vpop.f32.mrb[0].mxu0
    %v637 = vadd.f32 %v556, %v636
    %v638 = vpop.f32.mrb[0].mxu0
    %639 = vdwg.mxu0
    %640 = vrot.lane.b32.xlu0 %v539, 96
    %v641 = vpop.permute.xlu0 %640
    %642 = vrot.lane.b32.xlu0 %v544, 96
    %v643 = vpop.permute.xlu0 %642
    %v644 = vsel %vm558, %v641, 0
    %v646 = vsel %vm558, %v643, 0
    %648 = vmatprep.subr.mxu0 0.0
    %649 = vmatpush1.msra.mxu0 %v547
    %650 = vmatprep.subr.mxu0 0.0
    %651 = vmatpush1.msra.mxu0 %v548
    %652 = vmatprep.subr.mxu0 0.0
    %653 = vmatpush1.msra.mxu0 %v549
    %654 = vmatprep.subr.mxu0 0.0
    %655 = vmatpush1.msra.mxu0 %v550
    %656 = vmatprep.subr.mxu0 0.0
    %657 = vmatpush1.msra.mxu0 0.0
    %658 = vmatprep.subr.mxu0 0.0
    %659 = vmatpush1.msra.mxu0 0.0
    %660 = vmatprep.subr.mxu0 0.0
    %661 = vmatpush1.msra.mxu0 0.0
    %662 = vmatprep.subr.mxu0 0.0
    %663 = vmatpush1.msra.mxu0 0.0
    %664 = vmatprep.subr.mxu0 0.0
    %665 = vmatpush1.msra.mxu0 0.0
    %666 = vmatprep.subr.mxu0 0.0
    %667 = vmatpush1.msra.mxu0 0.0
    %668 = vmatprep.subr.mxu0 0.0
    %669 = vmatpush1.msra.mxu0 0.0
    %670 = vmatprep.subr.mxu0 0.0
    %671 = vmatpush1.msra.mxu0 0.0
    %672 = vmatprep.subr.mxu0 0.0
    %673 = vmatpush1.msra.mxu0 0.0
    %674 = vmatprep.subr.mxu0 0.0
    %675 = vmatpush1.msra.mxu0 0.0
    %676 = vmatprep.subr.mxu0 0.0
    %677 = vmatpush1.msra.mxu0 0.0
    %678 = vmatprep.subr.mxu0 0.0
    %679 = vmatpush1.msra.mxu0 0.0
    %680 = vmatprep.subr.mxu0 0.0
    %681 = vmatpush1.msra.mxu0 0.0
    %682 = vmatprep.subr.mxu0 0.0
    %683 = vmatpush1.msra.mxu0 0.0
    %684 = vmatprep.subr.mxu0 0.0
    %685 = vmatpush1.msra.mxu0 0.0
    %686 = vmatprep.subr.mxu0 0.0
    %687 = vmatpush1.msra.mxu0 0.0
    %688 = vmatprep.subr.mxu0 0.0
    %689 = vmatpush1.msra.mxu0 0.0
    %690 = vmatprep.subr.mxu0 0.0
    %691 = vmatpush1.msra.mxu0 0.0
    %692 = vmatprep.subr.mxu0 0.0
    %693 = vmatpush1.msra.mxu0 0.0
    %694 = vmatprep.subr.mxu0 0.0
    %695 = vmatpush1.msra.mxu0 0.0
    %696 = vmatprep.subr.mxu0 0.0
    %697 = vmatpush1.msra.mxu0 0.0
    %698 = vmatprep.subr.mxu0 0.0
    %699 = vmatpush1.msra.mxu0 0.0
    %700 = vmatprep.subr.mxu0 0.0
    %701 = vmatpush1.msra.mxu0 0.0
    %702 = vmatprep.subr.mxu0 0.0
    %703 = vmatpush1.msra.mxu0 0.0
    %704 = vmatprep.subr.mxu0 0.0
    %705 = vmatpush1.msra.mxu0 0.0
    %706 = vmatprep.subr.mxu0 0.0
    %707 = vmatpush1.msra.mxu0 0.0
    %708 = vmatprep.subr.mxu0 0.0
    %709 = vmatpush1.msra.mxu0 0.0
    %710 = vmatprep.subr.mxu0 0.0
    %711 = vmatpush1.msra.mxu0 0.0
    %712 = vmatprep.mubr.f32.mxu0 0.0
    %713 = vmatmul.mubr.f32.gmra.mrb[0].mxu0 %v644
    %v714 = vpop.f32.mrb[0].mxu0
    %v715 = vadd.f32 %v556, %v714
    %v716 = vpop.f32.mrb[0].mxu0
    %717 = vmatprep.mubr.f32.mxu0 0.0
    %718 = vmatmul.mubr.f32.gmra.mrb[0].mxu0 %v646
    %v719 = vpop.f32.mrb[0].mxu0
    %v720 = vadd.f32 %v556, %v719
    %v721 = vpop.f32.mrb[0].mxu0
    %722 = vdwg.mxu0
    %725 = vrot.lane.b32.xlu0 %v715, 16
    %v726 = vpop.permute.xlu0 %725
    %727 = vrot.lane.b32.xlu0 %v720, 16
    %v728 = vpop.permute.xlu0 %727
    %v731 = vsel %vm198, %v632, %v726
    %v732 = vsel %vm198, %v637, %v728
    %v733 = vld [vmem:[%s17] sm:$0x1]
    %v734 = vld [vmem:[%s18] sm:$0x1]
    %v735 = vmax.f32 %v733, 0.0
    %v736 = vsub.f32 %v733, %v735
    %v737 = vmax.f32 %v734, 0.0
    %v738 = vsub.f32 %v737, %v736
    %v739 = vadd.f32 %v738, 1e-08
    %v740 = vrcp.pop %v739
    %v741 = vmul.f32 %v737, %v740
    %v742 = vsub.f32 1.0, %v741
    %v744 = vlaneseq
    %v745 = vshrl.u32 %v744, 7
    %v746 = vsub.s32 0, %v745
    %v747 = vrot.slane %v741, %v746
    %v749 = vmul.f32 %v123, %v747
    %v750 = vmul.f32 %v128, %v747
    %v752 = vlaneseq
    %v753 = vshrl.u32 %v752, 7
    %v754 = vsub.s32 0, %v753
    %v755 = vrot.slane %v742, %v754
    %v757 = vmul.f32 %v140, %v755
    %v758 = vmul.f32 %v144, %v755
    %v759 = vadd.f32 %v749, %v757
    %v760 = vadd.f32 %v750, %v758
    %v762 = vlaneseq
    %v763 = vshrl.u32 %v762, 7
    %v764 = vsub.s32 0, %v763
    %v765 = vrot.slane %v738, %v764
    %v767 = vmul.f32 %v158, %v765
    %v768 = vmul.f32 %v162, %v765
    %v769 = vadd.f32 %v759, %v767
    %v770 = vadd.f32 %v760, %v768
    %v771 = vadd.f32 %v769, %v177
    %v772 = vadd.f32 %v770, %v182
    %v773 = vmax.f32 %v771, 0.0
    %v774 = vmax.f32 %v772, 0.0
    %775 = vmatprep.subr.mxu0 0.0
    %776 = vmatpush1.msra.mxu0 %v773
    %777 = vmatprep.subr.mxu0 0.0
    %778 = vmatpush1.msra.mxu0 %v774
    %779 = vmatprep.subr.mxu0 0.0
    %780 = vmatpush1.msra.mxu0 0.0
    %781 = vmatprep.subr.mxu0 0.0
    %782 = vmatpush1.msra.mxu0 0.0
    %783 = vmatprep.subr.mxu0 0.0
    %784 = vmatpush1.msra.mxu0 0.0
    %785 = vmatprep.subr.mxu0 0.0
    %786 = vmatpush1.msra.mxu0 0.0
    %787 = vmatprep.subr.mxu0 0.0
    %788 = vmatpush1.msra.mxu0 0.0
    %789 = vmatprep.subr.mxu0 0.0
    %790 = vmatpush1.msra.mxu0 0.0
    %791 = vmatprep.subr.mxu0 0.0
    %792 = vmatpush1.msra.mxu0 0.0
    %793 = vmatprep.subr.mxu0 0.0
    %794 = vmatpush1.msra.mxu0 0.0
    %795 = vmatprep.subr.mxu0 0.0
    %796 = vmatpush1.msra.mxu0 0.0
    %797 = vmatprep.subr.mxu0 0.0
    %798 = vmatpush1.msra.mxu0 0.0
    %799 = vmatprep.subr.mxu0 0.0
    %800 = vmatpush1.msra.mxu0 0.0
    %801 = vmatprep.subr.mxu0 0.0
    %802 = vmatpush1.msra.mxu0 0.0
    %803 = vmatprep.subr.mxu0 0.0
    %804 = vmatpush1.msra.mxu0 0.0
    %805 = vmatprep.subr.mxu0 0.0
    %806 = vmatpush1.msra.mxu0 0.0
    %807 = vmatprep.subr.mxu0 0.0
    %808 = vmatpush1.msra.mxu0 0.0
    %809 = vmatprep.subr.mxu0 0.0
    %810 = vmatpush1.msra.mxu0 0.0
    %811 = vmatprep.subr.mxu0 0.0
    %812 = vmatpush1.msra.mxu0 0.0
    %813 = vmatprep.subr.mxu0 0.0
    %814 = vmatpush1.msra.mxu0 0.0
    %815 = vmatprep.subr.mxu0 0.0
    %816 = vmatpush1.msra.mxu0 0.0
    %817 = vmatprep.subr.mxu0 0.0
    %818 = vmatpush1.msra.mxu0 0.0
    %819 = vmatprep.subr.mxu0 0.0
    %820 = vmatpush1.msra.mxu0 0.0
    %821 = vmatprep.subr.mxu0 0.0
    %822 = vmatpush1.msra.mxu0 0.0
    %823 = vmatprep.subr.mxu0 0.0
    %824 = vmatpush1.msra.mxu0 0.0
    %825 = vmatprep.subr.mxu0 0.0
    %826 = vmatpush1.msra.mxu0 0.0
    %827 = vmatprep.subr.mxu0 0.0
    %828 = vmatpush1.msra.mxu0 0.0
    %829 = vmatprep.subr.mxu0 0.0
    %830 = vmatpush1.msra.mxu0 0.0
    %831 = vmatprep.subr.mxu0 0.0
    %832 = vmatpush1.msra.mxu0 0.0
    %833 = vmatprep.subr.mxu0 0.0
    %834 = vmatpush1.msra.mxu0 0.0
    %835 = vmatprep.subr.mxu0 0.0
    %836 = vmatpush1.msra.mxu0 0.0
    %837 = vmatprep.subr.mxu0 0.0
    %838 = vmatpush1.msra.mxu0 0.0
    %839 = vmatprep.mubr.f32.mxu0 0.0
    %840 = vmatmul.mubr.f32.gmra.mrb[0].mxu0 %v200
    %v841 = vpop.f32.mrb[0].mxu0
    %v842 = vadd.f32 %v191, %v841
    %v843 = vpop.f32.mrb[0].mxu0
    %844 = vmatprep.mubr.f32.mxu0 0.0
    %845 = vmatmul.mubr.f32.gmra.mrb[0].mxu0 %v203
    %v846 = vpop.f32.mrb[0].mxu0
    %v847 = vadd.f32 %v196, %v846
    %v848 = vpop.f32.mrb[0].mxu0
    %849 = vdwg.mxu0
    %850 = vmatprep.subr.mxu0 0.0
    %851 = vmatpush1.msra.mxu0 %v842
    %852 = vmatprep.subr.mxu0 0.0
    %853 = vmatpush1.msra.mxu0 %v847
    %854 = vmatprep.subr.mxu0 0.0
    %855 = vmatpush1.msra.mxu0 0.0
    %856 = vmatprep.subr.mxu0 0.0
    %857 = vmatpush1.msra.mxu0 0.0
    %858 = vmatprep.subr.mxu0 0.0
    %859 = vmatpush1.msra.mxu0 0.0
    %860 = vmatprep.subr.mxu0 0.0
    %861 = vmatpush1.msra.mxu0 0.0
    %862 = vmatprep.subr.mxu0 0.0
    %863 = vmatpush1.msra.mxu0 0.0
    %864 = vmatprep.subr.mxu0 0.0
    %865 = vmatpush1.msra.mxu0 0.0
    %866 = vmatprep.subr.mxu0 0.0
    %867 = vmatpush1.msra.mxu0 0.0
    %868 = vmatprep.subr.mxu0 0.0
    %869 = vmatpush1.msra.mxu0 0.0
    %870 = vmatprep.subr.mxu0 0.0
    %871 = vmatpush1.msra.mxu0 0.0
    %872 = vmatprep.subr.mxu0 0.0
    %873 = vmatpush1.msra.mxu0 0.0
    %874 = vmatprep.subr.mxu0 0.0
    %875 = vmatpush1.msra.mxu0 0.0
    %876 = vmatprep.subr.mxu0 0.0
    %877 = vmatpush1.msra.mxu0 0.0
    %878 = vmatprep.subr.mxu0 0.0
    %879 = vmatpush1.msra.mxu0 0.0
    %880 = vmatprep.subr.mxu0 0.0
    %881 = vmatpush1.msra.mxu0 0.0
    %882 = vmatprep.subr.mxu0 0.0
    %883 = vmatpush1.msra.mxu0 0.0
    %884 = vmatprep.subr.mxu0 0.0
    %885 = vmatpush1.msra.mxu0 0.0
    %886 = vmatprep.subr.mxu0 0.0
    %887 = vmatpush1.msra.mxu0 0.0
    %888 = vmatprep.subr.mxu0 0.0
    %889 = vmatpush1.msra.mxu0 0.0
    %890 = vmatprep.subr.mxu0 0.0
    %891 = vmatpush1.msra.mxu0 0.0
    %892 = vmatprep.subr.mxu0 0.0
    %893 = vmatpush1.msra.mxu0 0.0
    %894 = vmatprep.subr.mxu0 0.0
    %895 = vmatpush1.msra.mxu0 0.0
    %896 = vmatprep.subr.mxu0 0.0
    %897 = vmatpush1.msra.mxu0 0.0
    %898 = vmatprep.subr.mxu0 0.0
    %899 = vmatpush1.msra.mxu0 0.0
    %900 = vmatprep.subr.mxu0 0.0
    %901 = vmatpush1.msra.mxu0 0.0
    %902 = vmatprep.subr.mxu0 0.0
    %903 = vmatpush1.msra.mxu0 0.0
    %904 = vmatprep.subr.mxu0 0.0
    %905 = vmatpush1.msra.mxu0 0.0
    %906 = vmatprep.subr.mxu0 0.0
    %907 = vmatpush1.msra.mxu0 0.0
    %908 = vmatprep.subr.mxu0 0.0
    %909 = vmatpush1.msra.mxu0 0.0
    %910 = vmatprep.subr.mxu0 0.0
    %911 = vmatpush1.msra.mxu0 0.0
    %912 = vmatprep.subr.mxu0 0.0
    %913 = vmatpush1.msra.mxu0 0.0
    %914 = vmatprep.mubr.f32.mxu0 0.0
    %915 = vmatmul.mubr.f32.gmra.mrb[0].mxu0 %v281
    %v916 = vpop.f32.mrb[0].mxu0
    %v917 = vadd.f32 0.0, %v916
    %v918 = vpop.f32.mrb[0].mxu0
    %919 = vmatprep.mubr.f32.mxu0 0.0
    %920 = vmatmul.mubr.f32.gmra.mrb[0].mxu0 %v284
    %v921 = vpop.f32.mrb[0].mxu0
    %v922 = vadd.f32 0.0, %v921
    %v923 = vpop.f32.mrb[0].mxu0
    %924 = vdwg.mxu0
    %925 = vmatprep.subr.mxu0 0.0
    %926 = vmatpush1.msra.mxu0 %v731
    %927 = vmatprep.subr.mxu0 0.0
    %928 = vmatpush1.msra.mxu0 %v732
    %929 = vmatprep.subr.mxu0 0.0
    %930 = vmatpush1.msra.mxu0 0.0
    %931 = vmatprep.subr.mxu0 0.0
    %932 = vmatpush1.msra.mxu0 0.0
    %933 = vmatprep.subr.mxu0 0.0
    %934 = vmatpush1.msra.mxu0 0.0
    %935 = vmatprep.subr.mxu0 0.0
    %936 = vmatpush1.msra.mxu0 0.0
    %937 = vmatprep.subr.mxu0 0.0
    %938 = vmatpush1.msra.mxu0 0.0
    %939 = vmatprep.subr.mxu0 0.0
    %940 = vmatpush1.msra.mxu0 0.0
    %941 = vmatprep.subr.mxu0 0.0
    %942 = vmatpush1.msra.mxu0 0.0
    %943 = vmatprep.subr.mxu0 0.0
    %944 = vmatpush1.msra.mxu0 0.0
    %945 = vmatprep.subr.mxu0 0.0
    %946 = vmatpush1.msra.mxu0 0.0
    %947 = vmatprep.subr.mxu0 0.0
    %948 = vmatpush1.msra.mxu0 0.0
    %949 = vmatprep.subr.mxu0 0.0
    %950 = vmatpush1.msra.mxu0 0.0
    %951 = vmatprep.subr.mxu0 0.0
    %952 = vmatpush1.msra.mxu0 0.0
    %953 = vmatprep.subr.mxu0 0.0
    %954 = vmatpush1.msra.mxu0 0.0
    %955 = vmatprep.subr.mxu0 0.0
    %956 = vmatpush1.msra.mxu0 0.0
    %957 = vmatprep.subr.mxu0 0.0
    %958 = vmatpush1.msra.mxu0 0.0
    %959 = vmatprep.subr.mxu0 0.0
    %960 = vmatpush1.msra.mxu0 0.0
    %961 = vmatprep.subr.mxu0 0.0
    %962 = vmatpush1.msra.mxu0 0.0
    %963 = vmatprep.subr.mxu0 0.0
    %964 = vmatpush1.msra.mxu0 0.0
    %965 = vmatprep.subr.mxu0 0.0
    %966 = vmatpush1.msra.mxu0 0.0
    %967 = vmatprep.subr.mxu0 0.0
    %968 = vmatpush1.msra.mxu0 0.0
    %969 = vmatprep.subr.mxu0 0.0
    %970 = vmatpush1.msra.mxu0 0.0
    %971 = vmatprep.subr.mxu0 0.0
    %972 = vmatpush1.msra.mxu0 0.0
    %973 = vmatprep.subr.mxu0 0.0
    %974 = vmatpush1.msra.mxu0 0.0
    %975 = vmatprep.subr.mxu0 0.0
    %976 = vmatpush1.msra.mxu0 0.0
    %977 = vmatprep.subr.mxu0 0.0
    %978 = vmatpush1.msra.mxu0 0.0
    %979 = vmatprep.subr.mxu0 0.0
    %980 = vmatpush1.msra.mxu0 0.0
    %981 = vmatprep.subr.mxu0 0.0
    %982 = vmatpush1.msra.mxu0 0.0
    %983 = vmatprep.subr.mxu0 0.0
    %984 = vmatpush1.msra.mxu0 0.0
    %985 = vmatprep.subr.mxu0 0.0
    %986 = vmatpush1.msra.mxu0 0.0
    %987 = vmatprep.subr.mxu0 0.0
    %988 = vmatpush1.msra.mxu0 0.0
    %989 = vmatprep.mubr.f32.mxu0 0.0
    %990 = vmatmul.mubr.f32.gmra.mrb[0].mxu0 %v362
    %v991 = vpop.f32.mrb[0].mxu0
    %v992 = vadd.f32 %v917, %v991
    %v993 = vpop.f32.mrb[0].mxu0
    %994 = vmatprep.mubr.f32.mxu0 0.0
    %995 = vmatmul.mubr.f32.gmra.mrb[0].mxu0 %v365
    %v996 = vpop.f32.mrb[0].mxu0
    %v997 = vadd.f32 %v922, %v996
    %v998 = vpop.f32.mrb[0].mxu0
    %999 = vdwg.mxu0
    %v1000 = vadd.f32 %v992, %v445
    %v1001 = vadd.f32 %v997, %v450
    %v1002 = vmax.f32 %v1000, 0.0
    %v1003 = vmax.f32 %v1001, 0.0
    %1004 = vmatprep.subr.mxu0 0.0
    %1005 = vmatpush1.msra.mxu0 %v1002
    %1006 = vmatprep.subr.mxu0 0.0
    %1007 = vmatpush1.msra.mxu0 %v1003
    %1008 = vmatprep.subr.mxu0 0.0
    %1009 = vmatpush1.msra.mxu0 0.0
    %1010 = vmatprep.subr.mxu0 0.0
    %1011 = vmatpush1.msra.mxu0 0.0
    %1012 = vmatprep.subr.mxu0 0.0
    %1013 = vmatpush1.msra.mxu0 0.0
    %1014 = vmatprep.subr.mxu0 0.0
    %1015 = vmatpush1.msra.mxu0 0.0
    %1016 = vmatprep.subr.mxu0 0.0
    %1017 = vmatpush1.msra.mxu0 0.0
    %1018 = vmatprep.subr.mxu0 0.0
    %1019 = vmatpush1.msra.mxu0 0.0
    %1020 = vmatprep.subr.mxu0 0.0
    %1021 = vmatpush1.msra.mxu0 0.0
    %1022 = vmatprep.subr.mxu0 0.0
    %1023 = vmatpush1.msra.mxu0 0.0
    %1024 = vmatprep.subr.mxu0 0.0
    %1025 = vmatpush1.msra.mxu0 0.0
    %1026 = vmatprep.subr.mxu0 0.0
    %1027 = vmatpush1.msra.mxu0 0.0
    %1028 = vmatprep.subr.mxu0 0.0
    %1029 = vmatpush1.msra.mxu0 0.0
    %1030 = vmatprep.subr.mxu0 0.0
    %1031 = vmatpush1.msra.mxu0 0.0
    %1032 = vmatprep.subr.mxu0 0.0
    %1033 = vmatpush1.msra.mxu0 0.0
    %1034 = vmatprep.subr.mxu0 0.0
    %1035 = vmatpush1.msra.mxu0 0.0
    %1036 = vmatprep.subr.mxu0 0.0
    %1037 = vmatpush1.msra.mxu0 0.0
    %1038 = vmatprep.subr.mxu0 0.0
    %1039 = vmatpush1.msra.mxu0 0.0
    %1040 = vmatprep.subr.mxu0 0.0
    %1041 = vmatpush1.msra.mxu0 0.0
    %1042 = vmatprep.subr.mxu0 0.0
    %1043 = vmatpush1.msra.mxu0 0.0
    %1044 = vmatprep.subr.mxu0 0.0
    %1045 = vmatpush1.msra.mxu0 0.0
    %1046 = vmatprep.subr.mxu0 0.0
    %1047 = vmatpush1.msra.mxu0 0.0
    %1048 = vmatprep.subr.mxu0 0.0
    %1049 = vmatpush1.msra.mxu0 0.0
    %1050 = vmatprep.subr.mxu0 0.0
    %1051 = vmatpush1.msra.mxu0 0.0
    %1052 = vmatprep.subr.mxu0 0.0
    %1053 = vmatpush1.msra.mxu0 0.0
    %1054 = vmatprep.subr.mxu0 0.0
    %1055 = vmatpush1.msra.mxu0 0.0
    %1056 = vmatprep.subr.mxu0 0.0
    %1057 = vmatpush1.msra.mxu0 0.0
    %1058 = vmatprep.subr.mxu0 0.0
    %1059 = vmatpush1.msra.mxu0 0.0
    %1060 = vmatprep.subr.mxu0 0.0
    %1061 = vmatpush1.msra.mxu0 0.0
    %1062 = vmatprep.subr.mxu0 0.0
    %1063 = vmatpush1.msra.mxu0 0.0
    %1064 = vmatprep.subr.mxu0 0.0
    %1065 = vmatpush1.msra.mxu0 0.0
    %1066 = vmatprep.subr.mxu0 0.0
    %1067 = vmatpush1.msra.mxu0 0.0
    %1068 = vmatprep.mubr.f32.mxu0 0.0
    %1069 = vmatmul.mubr.f32.gmra.mrb[0].mxu0 %v467
    %v1070 = vpop.f32.mrb[0].mxu0
    %v1071 = vadd.f32 %v459, %v1070
    %v1072 = vpop.f32.mrb[0].mxu0
    %1073 = vmatprep.mubr.f32.mxu0 0.0
    %1074 = vmatmul.mubr.f32.gmra.mrb[0].mxu0 %v470
    %v1075 = vpop.f32.mrb[0].mxu0
    %v1076 = vadd.f32 %v464, %v1075
    %v1077 = vpop.f32.mrb[0].mxu0
    %1078 = vdwg.mxu0
    %v1079 = vld [vmem:[%s20] sm:$0xff]
    %v1080 = vld [vmem:[%s20 + $0x8] sm:$0xff]
    %v1081 = vsub.f32 %v1071, %v556
    %v1082 = vsub.f32 %v1076, %v556
    %v1084 = vsel %vm198, %v1081, 0
    %v1087 = vsel %vm198, %v1082, 0
    %1089 = vmatprep.subr.mxu0 0.0
    %1090 = vmatpush1.msra.mxu0 %v1079
    %1091 = vmatprep.subr.mxu0 0.0
    %1092 = vmatpush1.msra.mxu0 %v1080
    %1093 = vmatprep.subr.mxu0 0.0
    %1094 = vmatpush1.msra.mxu0 0.0
    %1095 = vmatprep.subr.mxu0 0.0
    %1096 = vmatpush1.msra.mxu0 0.0
    %1097 = vmatprep.subr.mxu0 0.0
    %1098 = vmatpush1.msra.mxu0 0.0
    %1099 = vmatprep.subr.mxu0 0.0
    %1100 = vmatpush1.msra.mxu0 0.0
    %1101 = vmatprep.subr.mxu0 0.0
    %1102 = vmatpush1.msra.mxu0 0.0
    %1103 = vmatprep.subr.mxu0 0.0
    %1104 = vmatpush1.msra.mxu0 0.0
    %1105 = vmatprep.subr.mxu0 0.0
    %1106 = vmatpush1.msra.mxu0 0.0
    %1107 = vmatprep.subr.mxu0 0.0
    %1108 = vmatpush1.msra.mxu0 0.0
    %1109 = vmatprep.subr.mxu0 0.0
    %1110 = vmatpush1.msra.mxu0 0.0
    %1111 = vmatprep.subr.mxu0 0.0
    %1112 = vmatpush1.msra.mxu0 0.0
    %1113 = vmatprep.subr.mxu0 0.0
    %1114 = vmatpush1.msra.mxu0 0.0
    %1115 = vmatprep.subr.mxu0 0.0
    %1116 = vmatpush1.msra.mxu0 0.0
    %1117 = vmatprep.subr.mxu0 0.0
    %1118 = vmatpush1.msra.mxu0 0.0
    %1119 = vmatprep.subr.mxu0 0.0
    %1120 = vmatpush1.msra.mxu0 0.0
    %1121 = vmatprep.subr.mxu0 0.0
    %1122 = vmatpush1.msra.mxu0 0.0
    %1123 = vmatprep.subr.mxu0 0.0
    %1124 = vmatpush1.msra.mxu0 0.0
    %1125 = vmatprep.subr.mxu0 0.0
    %1126 = vmatpush1.msra.mxu0 0.0
    %1127 = vmatprep.subr.mxu0 0.0
    %1128 = vmatpush1.msra.mxu0 0.0
    %1129 = vmatprep.subr.mxu0 0.0
    %1130 = vmatpush1.msra.mxu0 0.0
    %1131 = vmatprep.subr.mxu0 0.0
    %1132 = vmatpush1.msra.mxu0 0.0
    %1133 = vmatprep.subr.mxu0 0.0
    %1134 = vmatpush1.msra.mxu0 0.0
    %1135 = vmatprep.subr.mxu0 0.0
    %1136 = vmatpush1.msra.mxu0 0.0
    %1137 = vmatprep.subr.mxu0 0.0
    %1138 = vmatpush1.msra.mxu0 0.0
    %1139 = vmatprep.subr.mxu0 0.0
    %1140 = vmatpush1.msra.mxu0 0.0
    %1141 = vmatprep.subr.mxu0 0.0
    %1142 = vmatpush1.msra.mxu0 0.0
    %1143 = vmatprep.subr.mxu0 0.0
    %1144 = vmatpush1.msra.mxu0 0.0
    %1145 = vmatprep.subr.mxu0 0.0
    %1146 = vmatpush1.msra.mxu0 0.0
    %1147 = vmatprep.subr.mxu0 0.0
    %1148 = vmatpush1.msra.mxu0 0.0
    %1149 = vmatprep.subr.mxu0 0.0
    %1150 = vmatpush1.msra.mxu0 0.0
    %1151 = vmatprep.subr.mxu0 0.0
    %1152 = vmatpush1.msra.mxu0 0.0
    %1153 = vmatprep.mubr.f32.mxu0 0.0
    %1154 = vmatmul.mubr.f32.gmra.mrb[0].mxu0 %v1084
    %v1155 = vpop.f32.mrb[0].mxu0
    %v1156 = vadd.f32 0.0, %v1155
    %v1157 = vpop.f32.mrb[0].mxu0
    %1158 = vmatprep.mubr.f32.mxu0 0.0
    %1159 = vmatmul.mubr.f32.gmra.mrb[0].mxu0 %v1087
    %v1160 = vpop.f32.mrb[0].mxu0
    %v1161 = vadd.f32 0.0, %v1160
    %v1162 = vpop.f32.mrb[0].mxu0
    %1163 = vdwg.mxu0
    %1164 = vrot.lane.b32.xlu0 %v556, 16
    %v1165 = vpop.permute.xlu0 %1164
    %v1167 = vsub.f32 %v1071, %v1165
    %v1168 = vsub.f32 %v1076, %v1165
    %1171 = vrot.lane.b32.xlu0 %v1167, 112
    %v1172 = vpop.permute.xlu0 %1171
    %1173 = vrot.lane.b32.xlu0 %v1168, 112
    %v1174 = vpop.permute.xlu0 %1173
    %v1175 = vsel %vm198, %v1172, 0
    %v1177 = vsel %vm198, %v1174, 0
    %1179 = vmatprep.subr.mxu0 0.0
    %1180 = vmatpush1.msra.mxu0 %v1079
    %1181 = vmatprep.subr.mxu0 0.0
    %1182 = vmatpush1.msra.mxu0 %v1080
    %1183 = vmatprep.subr.mxu0 0.0
    %1184 = vmatpush1.msra.mxu0 0.0
    %1185 = vmatprep.subr.mxu0 0.0
    %1186 = vmatpush1.msra.mxu0 0.0
    %1187 = vmatprep.subr.mxu0 0.0
    %1188 = vmatpush1.msra.mxu0 0.0
    %1189 = vmatprep.subr.mxu0 0.0
    %1190 = vmatpush1.msra.mxu0 0.0
    %1191 = vmatprep.subr.mxu0 0.0
    %1192 = vmatpush1.msra.mxu0 0.0
    %1193 = vmatprep.subr.mxu0 0.0
    %1194 = vmatpush1.msra.mxu0 0.0
    %1195 = vmatprep.subr.mxu0 0.0
    %1196 = vmatpush1.msra.mxu0 0.0
    %1197 = vmatprep.subr.mxu0 0.0
    %1198 = vmatpush1.msra.mxu0 0.0
    %1199 = vmatprep.subr.mxu0 0.0
    %1200 = vmatpush1.msra.mxu0 0.0
    %1201 = vmatprep.subr.mxu0 0.0
    %1202 = vmatpush1.msra.mxu0 0.0
    %1203 = vmatprep.subr.mxu0 0.0
    %1204 = vmatpush1.msra.mxu0 0.0
    %1205 = vmatprep.subr.mxu0 0.0
    %1206 = vmatpush1.msra.mxu0 0.0
    %1207 = vmatprep.subr.mxu0 0.0
    %1208 = vmatpush1.msra.mxu0 0.0
    %1209 = vmatprep.subr.mxu0 0.0
    %1210 = vmatpush1.msra.mxu0 0.0
    %1211 = vmatprep.subr.mxu0 0.0
    %1212 = vmatpush1.msra.mxu0 0.0
    %1213 = vmatprep.subr.mxu0 0.0
    %1214 = vmatpush1.msra.mxu0 0.0
    %1215 = vmatprep.subr.mxu0 0.0
    %1216 = vmatpush1.msra.mxu0 0.0
    %1217 = vmatprep.subr.mxu0 0.0
    %1218 = vmatpush1.msra.mxu0 0.0
    %1219 = vmatprep.subr.mxu0 0.0
    %1220 = vmatpush1.msra.mxu0 0.0
    %1221 = vmatprep.subr.mxu0 0.0
    %1222 = vmatpush1.msra.mxu0 0.0
    %1223 = vmatprep.subr.mxu0 0.0
    %1224 = vmatpush1.msra.mxu0 0.0
    %1225 = vmatprep.subr.mxu0 0.0
    %1226 = vmatpush1.msra.mxu0 0.0
    %1227 = vmatprep.subr.mxu0 0.0
    %1228 = vmatpush1.msra.mxu0 0.0
    %1229 = vmatprep.subr.mxu0 0.0
    %1230 = vmatpush1.msra.mxu0 0.0
    %1231 = vmatprep.subr.mxu0 0.0
    %1232 = vmatpush1.msra.mxu0 0.0
    %1233 = vmatprep.subr.mxu0 0.0
    %1234 = vmatpush1.msra.mxu0 0.0
    %1235 = vmatprep.subr.mxu0 0.0
    %1236 = vmatpush1.msra.mxu0 0.0
    %1237 = vmatprep.subr.mxu0 0.0
    %1238 = vmatpush1.msra.mxu0 0.0
    %1239 = vmatprep.subr.mxu0 0.0
    %1240 = vmatpush1.msra.mxu0 0.0
    %1241 = vmatprep.subr.mxu0 0.0
    %1242 = vmatpush1.msra.mxu0 0.0
    %1243 = vmatprep.mubr.f32.mxu0 0.0
    %1244 = vmatmul.mubr.f32.gmra.mrb[0].mxu0 %v1175
    %v1245 = vpop.f32.mrb[0].mxu0
    %v1246 = vadd.f32 0.0, %v1245
    %v1247 = vpop.f32.mrb[0].mxu0
    %1248 = vmatprep.mubr.f32.mxu0 0.0
    %1249 = vmatmul.mubr.f32.gmra.mrb[0].mxu0 %v1177
    %v1250 = vpop.f32.mrb[0].mxu0
    %v1251 = vadd.f32 0.0, %v1250
    %v1252 = vpop.f32.mrb[0].mxu0
    %1253 = vdwg.mxu0
    %1256 = vrot.lane.b32.xlu0 %v1246, 32
    %v1257 = vpop.permute.xlu0 %1256
    %1258 = vrot.lane.b32.xlu0 %v1251, 32
    %v1259 = vpop.permute.xlu0 %1258
    %v1262 = vsel %vm558, %v1156, %v1257
    %v1263 = vsel %vm558, %v1161, %v1259
    %v1265 = vsel %vm198, %v95, 0
    %v1268 = vsel %vm198, %v96, 0
    %1270 = vmatprep.subr.mxu0 0.0
    %1271 = vmatpush1.msra.mxu0 %v539
    %1272 = vmatprep.subr.mxu0 0.0
    %1273 = vmatpush1.msra.mxu0 %v544
    %1274 = vmatprep.subr.mxu0 0.0
    %1275 = vmatpush1.msra.mxu0 0.0
    %1276 = vmatprep.subr.mxu0 0.0
    %1277 = vmatpush1.msra.mxu0 0.0
    %1278 = vmatprep.subr.mxu0 0.0
    %1279 = vmatpush1.msra.mxu0 0.0
    %1280 = vmatprep.subr.mxu0 0.0
    %1281 = vmatpush1.msra.mxu0 0.0
    %1282 = vmatprep.subr.mxu0 0.0
    %1283 = vmatpush1.msra.mxu0 0.0
    %1284 = vmatprep.subr.mxu0 0.0
    %1285 = vmatpush1.msra.mxu0 0.0
    %1286 = vmatprep.subr.mxu0 0.0
    %1287 = vmatpush1.msra.mxu0 0.0
    %1288 = vmatprep.subr.mxu0 0.0
    %1289 = vmatpush1.msra.mxu0 0.0
    %1290 = vmatprep.subr.mxu0 0.0
    %1291 = vmatpush1.msra.mxu0 0.0
    %1292 = vmatprep.subr.mxu0 0.0
    %1293 = vmatpush1.msra.mxu0 0.0
    %1294 = vmatprep.subr.mxu0 0.0
    %1295 = vmatpush1.msra.mxu0 0.0
    %1296 = vmatprep.subr.mxu0 0.0
    %1297 = vmatpush1.msra.mxu0 0.0
    %1298 = vmatprep.subr.mxu0 0.0
    %1299 = vmatpush1.msra.mxu0 0.0
    %1300 = vmatprep.subr.mxu0 0.0
    %1301 = vmatpush1.msra.mxu0 0.0
    %1302 = vmatprep.subr.mxu0 0.0
    %1303 = vmatpush1.msra.mxu0 0.0
    %1304 = vmatprep.subr.mxu0 0.0
    %1305 = vmatpush1.msra.mxu0 0.0
    %1306 = vmatprep.subr.mxu0 0.0
    %1307 = vmatpush1.msra.mxu0 0.0
    %1308 = vmatprep.subr.mxu0 0.0
    %1309 = vmatpush1.msra.mxu0 0.0
    %1310 = vmatprep.subr.mxu0 0.0
    %1311 = vmatpush1.msra.mxu0 0.0
    %1312 = vmatprep.subr.mxu0 0.0
    %1313 = vmatpush1.msra.mxu0 0.0
    %1314 = vmatprep.subr.mxu0 0.0
    %1315 = vmatpush1.msra.mxu0 0.0
    %1316 = vmatprep.subr.mxu0 0.0
    %1317 = vmatpush1.msra.mxu0 0.0
    %1318 = vmatprep.subr.mxu0 0.0
    %1319 = vmatpush1.msra.mxu0 0.0
    %1320 = vmatprep.subr.mxu0 0.0
    %1321 = vmatpush1.msra.mxu0 0.0
    %1322 = vmatprep.subr.mxu0 0.0
    %1323 = vmatpush1.msra.mxu0 0.0
    %1324 = vmatprep.subr.mxu0 0.0
    %1325 = vmatpush1.msra.mxu0 0.0
    %1326 = vmatprep.subr.mxu0 0.0
    %1327 = vmatpush1.msra.mxu0 0.0
    %1328 = vmatprep.subr.mxu0 0.0
    %1329 = vmatpush1.msra.mxu0 0.0
    %1330 = vmatprep.subr.mxu0 0.0
    %1331 = vmatpush1.msra.mxu0 0.0
    %1332 = vmatprep.subr.mxu0 0.0
    %1333 = vmatpush1.msra.mxu0 0.0
    %1334 = vmatprep.mubr.f32.mxu0 0.0
    %1335 = vmatmul.mubr.f32.gmra.mrb[0].mxu0 %v1265
    %v1336 = vpop.f32.mrb[0].mxu0
    %v1337 = vadd.f32 0.0, %v1336
    %v1338 = vpop.f32.mrb[0].mxu0
    %1339 = vmatprep.mubr.f32.mxu0 0.0
    %1340 = vmatmul.mubr.f32.gmra.mrb[0].mxu0 %v1268
    %v1341 = vpop.f32.mrb[0].mxu0
    %v1342 = vadd.f32 0.0, %v1341
    %v1343 = vpop.f32.mrb[0].mxu0
    %1344 = vdwg.mxu0
    %v1346 = vsel %vm198, %v93, 0
    %v1349 = vsel %vm198, %v94, 0
    %1351 = vmatprep.subr.mxu0 0.0
    %1352 = vmatpush1.msra.mxu0 %v1262
    %1353 = vmatprep.subr.mxu0 0.0
    %1354 = vmatpush1.msra.mxu0 %v1263
    %1355 = vmatprep.subr.mxu0 0.0
    %1356 = vmatpush1.msra.mxu0 0.0
    %1357 = vmatprep.subr.mxu0 0.0
    %1358 = vmatpush1.msra.mxu0 0.0
    %1359 = vmatprep.subr.mxu0 0.0
    %1360 = vmatpush1.msra.mxu0 0.0
    %1361 = vmatprep.subr.mxu0 0.0
    %1362 = vmatpush1.msra.mxu0 0.0
    %1363 = vmatprep.subr.mxu0 0.0
    %1364 = vmatpush1.msra.mxu0 0.0
    %1365 = vmatprep.subr.mxu0 0.0
    %1366 = vmatpush1.msra.mxu0 0.0
    %1367 = vmatprep.subr.mxu0 0.0
    %1368 = vmatpush1.msra.mxu0 0.0
    %1369 = vmatprep.subr.mxu0 0.0
    %1370 = vmatpush1.msra.mxu0 0.0
    %1371 = vmatprep.subr.mxu0 0.0
    %1372 = vmatpush1.msra.mxu0 0.0
    %1373 = vmatprep.subr.mxu0 0.0
    %1374 = vmatpush1.msra.mxu0 0.0
    %1375 = vmatprep.subr.mxu0 0.0
    %1376 = vmatpush1.msra.mxu0 0.0
    %1377 = vmatprep.subr.mxu0 0.0
    %1378 = vmatpush1.msra.mxu0 0.0
    %1379 = vmatprep.subr.mxu0 0.0
    %1380 = vmatpush1.msra.mxu0 0.0
    %1381 = vmatprep.subr.mxu0 0.0
    %1382 = vmatpush1.msra.mxu0 0.0
    %1383 = vmatprep.subr.mxu0 0.0
    %1384 = vmatpush1.msra.mxu0 0.0
    %1385 = vmatprep.subr.mxu0 0.0
    %1386 = vmatpush1.msra.mxu0 0.0
    %1387 = vmatprep.subr.mxu0 0.0
    %1388 = vmatpush1.msra.mxu0 0.0
    %1389 = vmatprep.subr.mxu0 0.0
    %1390 = vmatpush1.msra.mxu0 0.0
    %1391 = vmatprep.subr.mxu0 0.0
    %1392 = vmatpush1.msra.mxu0 0.0
    %1393 = vmatprep.subr.mxu0 0.0
    %1394 = vmatpush1.msra.mxu0 0.0
    %1395 = vmatprep.subr.mxu0 0.0
    %1396 = vmatpush1.msra.mxu0 0.0
    %1397 = vmatprep.subr.mxu0 0.0
    %1398 = vmatpush1.msra.mxu0 0.0
    %1399 = vmatprep.subr.mxu0 0.0
    %1400 = vmatpush1.msra.mxu0 0.0
    %1401 = vmatprep.subr.mxu0 0.0
    %1402 = vmatpush1.msra.mxu0 0.0
    %1403 = vmatprep.subr.mxu0 0.0
    %1404 = vmatpush1.msra.mxu0 0.0
    %1405 = vmatprep.subr.mxu0 0.0
    %1406 = vmatpush1.msra.mxu0 0.0
    %1407 = vmatprep.subr.mxu0 0.0
    %1408 = vmatpush1.msra.mxu0 0.0
    %1409 = vmatprep.subr.mxu0 0.0
    %1410 = vmatpush1.msra.mxu0 0.0
    %1411 = vmatprep.subr.mxu0 0.0
    %1412 = vmatpush1.msra.mxu0 0.0
    %1413 = vmatprep.subr.mxu0 0.0
    %1414 = vmatpush1.msra.mxu0 0.0
    %1415 = vmatprep.mubr.f32.mxu0 0.0
    %1416 = vmatmul.mubr.f32.gmra.mrb[0].mxu0 %v1346
    %v1417 = vpop.f32.mrb[0].mxu0
    %v1418 = vadd.f32 %v1337, %v1417
    %v1419 = vpop.f32.mrb[0].mxu0
    %1420 = vmatprep.mubr.f32.mxu0 0.0
    %1421 = vmatmul.mubr.f32.gmra.mrb[0].mxu0 %v1349
    %v1422 = vpop.f32.mrb[0].mxu0
    %v1423 = vadd.f32 %v1342, %v1422
    %v1424 = vpop.f32.mrb[0].mxu0
    %1425 = vdwg.mxu0
    %1427 = vset.pattern.permute.xlu0 0
    %1428 = vperm.xlu0 %1427, %v97
    %v1429 = vpop.permute.xlu0 %1428
    %1432 = vset.pattern.permute.xlu0 0
    %1433 = vperm.xlu0 %1432, %v98
    %v1434 = vpop.permute.xlu0 %1433
    %v1436 = vadd.f32 %v1418, %v1429
    %v1437 = vadd.f32 %v1423, %v1434
    %v1438 = vmax.f32 %v1436, 0.0
    %v1439 = vmax.f32 %v1437, 0.0
    %1441 = vset.pattern.permute.xlu0 0
    %1442 = vperm.xlu0 %1441, %v101
    %v1443 = vpop.permute.xlu0 %1442
    %1446 = vset.pattern.permute.xlu0 0
    %1447 = vperm.xlu0 %1446, %v102
    %v1448 = vpop.permute.xlu0 %1447
    %v1451 = vsel %vm198, %v99, 0
    %v1454 = vsel %vm198, %v100, 0
    %1456 = vmatprep.subr.mxu0 0.0
    %1457 = vmatpush1.msra.mxu0 %v1438
    %1458 = vmatprep.subr.mxu0 0.0
    %1459 = vmatpush1.msra.mxu0 %v1439
    %1460 = vmatprep.subr.mxu0 0.0
    %1461 = vmatpush1.msra.mxu0 0.0
    %1462 = vmatprep.subr.mxu0 0.0
    %1463 = vmatpush1.msra.mxu0 0.0
    %1464 = vmatprep.subr.mxu0 0.0
    %1465 = vmatpush1.msra.mxu0 0.0
    %1466 = vmatprep.subr.mxu0 0.0
    %1467 = vmatpush1.msra.mxu0 0.0
    %1468 = vmatprep.subr.mxu0 0.0
    %1469 = vmatpush1.msra.mxu0 0.0
    %1470 = vmatprep.subr.mxu0 0.0
    %1471 = vmatpush1.msra.mxu0 0.0
    %1472 = vmatprep.subr.mxu0 0.0
    %1473 = vmatpush1.msra.mxu0 0.0
    %1474 = vmatprep.subr.mxu0 0.0
    %1475 = vmatpush1.msra.mxu0 0.0
    %1476 = vmatprep.subr.mxu0 0.0
    %1477 = vmatpush1.msra.mxu0 0.0
    %1478 = vmatprep.subr.mxu0 0.0
    %1479 = vmatpush1.msra.mxu0 0.0
    %1480 = vmatprep.subr.mxu0 0.0
    %1481 = vmatpush1.msra.mxu0 0.0
    %1482 = vmatprep.subr.mxu0 0.0
    %1483 = vmatpush1.msra.mxu0 0.0
    %1484 = vmatprep.subr.mxu0 0.0
    %1485 = vmatpush1.msra.mxu0 0.0
    %1486 = vmatprep.subr.mxu0 0.0
    %1487 = vmatpush1.msra.mxu0 0.0
    %1488 = vmatprep.subr.mxu0 0.0
    %1489 = vmatpush1.msra.mxu0 0.0
    %1490 = vmatprep.subr.mxu0 0.0
    %1491 = vmatpush1.msra.mxu0 0.0
    %1492 = vmatprep.subr.mxu0 0.0
    %1493 = vmatpush1.msra.mxu0 0.0
    %1494 = vmatprep.subr.mxu0 0.0
    %1495 = vmatpush1.msra.mxu0 0.0
    %1496 = vmatprep.subr.mxu0 0.0
    %1497 = vmatpush1.msra.mxu0 0.0
    %1498 = vmatprep.subr.mxu0 0.0
    %1499 = vmatpush1.msra.mxu0 0.0
    %1500 = vmatprep.subr.mxu0 0.0
    %1501 = vmatpush1.msra.mxu0 0.0
    %1502 = vmatprep.subr.mxu0 0.0
    %1503 = vmatpush1.msra.mxu0 0.0
    %1504 = vmatprep.subr.mxu0 0.0
    %1505 = vmatpush1.msra.mxu0 0.0
    %1506 = vmatprep.subr.mxu0 0.0
    %1507 = vmatpush1.msra.mxu0 0.0
    %1508 = vmatprep.subr.mxu0 0.0
    %1509 = vmatpush1.msra.mxu0 0.0
    %1510 = vmatprep.subr.mxu0 0.0
    %1511 = vmatpush1.msra.mxu0 0.0
    %1512 = vmatprep.subr.mxu0 0.0
    %1513 = vmatpush1.msra.mxu0 0.0
    %1514 = vmatprep.subr.mxu0 0.0
    %1515 = vmatpush1.msra.mxu0 0.0
    %1516 = vmatprep.subr.mxu0 0.0
    %1517 = vmatpush1.msra.mxu0 0.0
    %1518 = vmatprep.subr.mxu0 0.0
    %1519 = vmatpush1.msra.mxu0 0.0
    %1520 = vmatprep.mubr.f32.mxu0 0.0
    %1521 = vmatmul.mubr.f32.gmra.mrb[0].mxu0 %v1451
    %v1522 = vpop.f32.mrb[0].mxu0
    %v1523 = vadd.f32 %v1443, %v1522
    %v1524 = vpop.f32.mrb[0].mxu0
    %1525 = vmatprep.mubr.f32.mxu0 0.0
    %1526 = vmatmul.mubr.f32.gmra.mrb[0].mxu0 %v1454
    %v1527 = vpop.f32.mrb[0].mxu0
    %v1528 = vadd.f32 %v1448, %v1527
    %v1529 = vpop.f32.mrb[0].mxu0
    %1530 = vdwg.mxu0
    %vm1531 = vcmask 523264
    %v1532 = vsel %vm1531, %v1523, 0.0
    %v1533 = vsel %vm1531, %v1528, 0.0
    %1534 = vst [vmem:[#allocation2] sm:$0xff] %v1532
    %1535 = vst [vmem:[#allocation2 + $0x8] sm:$0xff] %v1533
    %v1536 = vsel %vm558, %v1071, 0.0
    %v1537 = vsel %vm558, %v1076, 0.0
    %1538 = vst [vmem:[#allocation4] sm:$0xff] %v1536
    %1539 = vst [vmem:[#allocation4 + $0x8] sm:$0xff] %v1537
    // Predicated region
    $region90: #{tpu_custom_call.1} parent=1 // pred_check
      _
    $region91: #{tpu_custom_call.1} parent=1 // pred_check_branch
      %1541 = sbr.rel (0) target = $region93
    $region92: #{tpu_custom_call.1} parent=1 // pred_region
      %s1543 = ssub.s32 256, 256
      %1544 = vsyncadd [#allocation3], %s1543
      %s1545 = sshll.u32 [#allocation2], 4
      %s1546 = int_to_ptr.vmem [resolvable:$true] %s1545
      %1551 = dma.vmem_to_hbm [thread:$0]  %s1546, 256, %s22, [#allocation3], 128, 128, 8
    $region93: #{tpu_custom_call.1} parent=1 // pred_fallthru
      _
    // Predicated region
    $region94: #{tpu_custom_call.1} parent=1 // pred_check
      _
    $region95: #{tpu_custom_call.1} parent=1 // pred_check_branch
      %1553 = sbr.rel (0) target = $region97
    $region96: #{tpu_custom_call.1} parent=1 // pred_region
      %s1555 = ssub.s32 256, 256
      %1556 = vsyncadd [#allocation5], %s1555
      %s1557 = sshll.u32 [#allocation4], 4
      %s1558 = int_to_ptr.vmem [resolvable:$true] %s1557
      %1563 = dma.vmem_to_hbm [thread:$0]  %s1558, 256, %s23, [#allocation5], 128, 128, 8
    $region97: #{tpu_custom_call.1} parent=1 // pred_fallthru
      _
    // Predicated region
    $region98: #{tpu_custom_call.1} parent=1 // pred_check
      _
    $region99: #{tpu_custom_call.1} parent=1 // pred_check_branch
      %1565 = sbr.rel (0) target = $region101
    $region100: #{tpu_custom_call.1} parent=1 // pred_region
      %1566 = dma.done [#allocation3], 256
    $region101: #{tpu_custom_call.1} parent=1 // pred_fallthru
      _
    // Predicated region
    $region102: #{tpu_custom_call.1} parent=1 // pred_check
      _
    $region103: #{tpu_custom_call.1} parent=1 // pred_check_branch
      %1568 = sbr.rel (0) target = $region105
    $region104: #{tpu_custom_call.1} parent=1 // pred_region
      %1569 = dma.done [#allocation5], 256
    $region105: #{tpu_custom_call.1} parent=1 // pred_fallthru
      _
    %1570 = vsyncpa [#allocation3], 1
    %1571 = vsyncpa [#allocation5], 1

</llo_original>
